<compile_context>
chip_gen: v5e
topology: v5e:2x2
jax: 0.10.0
libtpu: 0.0.40
codegen_flags: <defaults>
</compile_context>

<pallas_src>
import functools

import jax
import jax.numpy as jnp
from jax.experimental import pallas as pl
from jax.experimental.pallas import tpu as pltpu

LANE = 128


def _round_up(n, m):
    return ((n + m - 1) // m) * m


# ----------------------------- Pallas kernel --------------------------------
def lstm_model_kernel(
    x_ref,      # (T*B, I)   time-major flattened: row = t*B + b
    wih0_ref,   # (I, 4H)    layer-0 input->gates (transposed)
    whh0_ref,   # (H, 4H)    layer-0 hidden->gates (transposed)
    b0_ref,     # (1, 4H)    layer-0 bias_ih + bias_hh
    w1_ref,     # (2H, 4H)   layer-1 stacked [W_ih1; W_hh1] (transposed)
    b1_ref,     # (1, 4H)
    fw1_ref,    # (H, P)     fc1 (transposed, lane-padded)
    fb1_ref,    # (1, P)
    fw2_ref,    # (P, P)     fc2 (transposed, lane-padded)
    fb2_ref,    # (1, P)
    out_ref,    # (B, P)     lane-dense padded output
):
    B = out_ref.shape[0]
    H = whh0_ref.shape[0]
    TB = x_ref.shape[0]
    T = TB // B

    # ---- hoisted layer-0 input projection for ALL timesteps (bias folded) ----
    xproj = (jnp.dot(x_ref[...], wih0_ref[...],
                     preferred_element_type=jnp.float32)
             + b0_ref[...])                                   # (T*B, 4H)

    whh0 = whh0_ref[...]
    w1 = w1_ref[...]
    b1b = jnp.broadcast_to(b1_ref[...], (B, 4 * H))           # hoisted broadcast

    def lstm_cell(gates, c):
        # Full-width non-linearities (2 EUP calls), then quadrant slices.
        sig = jax.nn.sigmoid(gates)                           # (B, 4H)
        tnh = jnp.tanh(gates)                                 # (B, 4H)
        i_g = sig[:, 0 * H:1 * H]
        f_g = sig[:, 1 * H:2 * H]
        g_g = tnh[:, 2 * H:3 * H]
        o_g = sig[:, 3 * H:4 * H]
        c_new = f_g * c + i_g * g_g
        h_new = o_g * jnp.tanh(c_new)
        return h_new, c_new

    zeros = jnp.zeros((B, H), jnp.float32)
    h0, c0, h1, c1 = zeros, zeros, zeros, zeros

    # T is static -> fully unrolled recurrence (static, sublane-aligned slices).
    for t in range(T):
        # layer 0: precomputed input projection + recurrent matmul
        g0 = xproj[t * B:(t + 1) * B, :] + jnp.dot(
            h0, whh0, preferred_element_type=jnp.float32)
        h0, c0 = lstm_cell(g0, c0)

        # layer 1: fused [input | recurrent] matmul
        # (dropout between layers is identity in eval mode)
        g1 = jnp.dot(jnp.concatenate([h0, h1], axis=1), w1,
                     preferred_element_type=jnp.float32) + b1b
        h1, c1 = lstm_cell(g1, c1)

    # lstm_out[:, -1, :] == final hidden state of the top layer (unidirectional)
    feat = h1                                                 # (B, H)

    # fc head: Dropout (id) -> Linear -> ReLU -> Dropout (id) -> Linear
    hid = jnp.maximum(
        jnp.dot(feat, fw1_ref[...], preferred_element_type=jnp.float32)
        + fb1_ref[...], 0.0)
    out = (jnp.dot(hid, fw2_ref[...], preferred_element_type=jnp.float32)
           + fb2_ref[...])
    out_ref[...] = out.astype(out_ref.dtype)                  # (B, P) unmasked store


# ------------------------------ wrapper --------------------------------------
@functools.partial(jax.jit, static_argnames=("output_size",))
def lstm_model_forward(x, kp, *, output_size):
    B, T, I = x.shape
    OP = kp["fw2"].shape[1]                 # lane-dense padded output width
    Bp = max(8, _round_up(B, 8))            # pad batch to sublane width

    # pad batch, go time-major, flatten to (T*Bp, I)
    xp = jnp.zeros((Bp, T, I), x.dtype).at[:B, :, :].set(x)
    x_tm = jnp.transpose(xp, (1, 0, 2)).reshape(T * Bp, I)

    args = (x_tm,
            kp["wih0"], kp["whh0"], kp["b0"],
            kp["w1"], kp["b1"],
            kp["fw1"], kp["fb1"], kp["fw2"], kp["fb2"])
    vmem = pl.BlockSpec(memory_space=pltpu.MemorySpace.VMEM)
    out = pl.pallas_call(
        lstm_model_kernel,
        out_shape=jax.ShapeDtypeStruct((Bp, OP), jnp.float32),
        in_specs=[vmem] * len(args),
        out_specs=vmem,
    )(*args)
    return out[:B, :output_size]


# --------------------- kernel-layout parameter packing ------------------------
def prepare_kernel_params(p, hidden_size, output_size):
    """Pack logical params into the lane-dense / fused layout the kernel expects."""
    H, O = hidden_size, output_size
    HP = max(LANE, _round_up(H // 2, LANE))   # fc hidden padded to lane width
    OP = max(LANE, _round_up(O, LANE))        # output padded to lane width
    P = max(HP, OP)

    fw1 = jnp.zeros((H, P), jnp.float32).at[:, :H // 2].set(p["fw1"])
    fb1 = jnp.zeros((1, P), jnp.float32).at[:, :H // 2].set(p["fb1"])
    fw2 = jnp.zeros((P, P), jnp.float32).at[:H // 2, :O].set(p["fw2"])
    fb2 = jnp.zeros((1, P), jnp.float32).at[:, :O].set(p["fb2"])
    w1 = jnp.concatenate([p["wih1"], p["whh1"]], axis=0)      # (2H, 4H)

    return {
        "wih0": p["wih0"], "whh0": p["whh0"], "b0": p["b0"],
        "w1": w1, "b1": p["b1"],
        "fw1": fw1, "fb1": fb1, "fw2": fw2, "fb2": fb2,
    }


# --------------------------- deterministic init -------------------------------
def xavier_uniform(key, shape):
    fan_out, fan_in = shape[0], shape[1]
    bound = (6.0 / (fan_in + fan_out)) ** 0.5
    return jax.random.uniform(key, shape, jnp.float32, -bound, bound)


def orthogonal(key, shape):
    a = jax.random.normal(key, shape, jnp.float32)
    q, r = jnp.linalg.qr(a.T if shape[0] < shape[1] else a)
    q = q * jnp.sign(jnp.diag(r))
    return (q.T if shape[0] < shape[1] else q)[:shape[0], :shape[1]]


def init_params(key, input_size, hidden_size, output_size):
    H = hidden_size
    keys = jax.random.split(key, 8)

    # LSTM layer 0: weight_ih (4H, I), weight_hh (4H, H)
    w_ih0 = xavier_uniform(keys[0], (4 * H, input_size))
    w_hh0 = orthogonal(keys[1], (4 * H, H))
    # LSTM layer 1: weight_ih (4H, H), weight_hh (4H, H)
    w_ih1 = xavier_uniform(keys[2], (4 * H, H))
    w_hh1 = orthogonal(keys[3], (4 * H, H))

    # biases: zeros, forget-gate slice [H:2H] = 1 in BOTH bias_ih and bias_hh
    def lstm_bias():
        b = jnp.zeros((4 * H,), jnp.float32)
        return b.at[H:2 * H].set(1.0)
    b0 = lstm_bias() + lstm_bias()   # combined bias_ih + bias_hh  -> forget bias = 2
    b1 = lstm_bias() + lstm_bias()

    # fc head
    fw1 = xavier_uniform(keys[4], (H // 2, H))      # Linear(H, H//2)
    fb1 = jnp.zeros((H // 2,), jnp.float32)
    fw2 = xavier_uniform(keys[5], (output_size, H // 2))
    fb2 = jnp.zeros((output_size,), jnp.float32)

    return {
        "wih0": w_ih0.T, "whh0": w_hh0.T, "b0": b0.reshape(1, -1),
        "wih1": w_ih1.T, "whh1": w_hh1.T, "b1": b1.reshape(1, -1),
        "fw1": fw1.T, "fb1": fb1.reshape(1, -1),
        "fw2": fw2.T, "fb2": fb2.reshape(1, -1),
    }


# ----------------------------- pure-JAX reference ------------------------------
def reference_forward(x, p):
    B, T, I = x.shape
    H = p["whh0"].shape[0]

    def cell(gates, c):
        i = jax.nn.sigmoid(gates[:, :H]); f = jax.nn.sigmoid(gates[:, H:2 * H])
        g = jnp.tanh(gates[:, 2 * H:3 * H]); o = jax.nn.sigmoid(gates[:, 3 * H:])
        c = f * c + i * g
        return o * jnp.tanh(c), c

    h0 = c0 = h1 = c1 = jnp.zeros((B, H), jnp.float32)
    for t in range(T):
        xt = x[:, t, :]
        h0, c0 = cell(xt @ p["wih0"] + h0 @ p["whh0"] + p["b0"], c0)
        h1, c1 = cell(h0 @ p["wih1"] + h1 @ p["whh1"] + p["b1"], c1)
    hid = jnp.maximum(h1 @ p["fw1"] + p["fb1"], 0.0)
    return hid @ p["fw2"] + p["fb2"]


# ---------------------------------- main --------------------------------------
if __name__ == "__main__":
    B, T, I = 2, 8, 1          # batch, sequence length, input features
    H, O = 32, 1               # hidden size, output size

    key = jax.random.PRNGKey(0)
    k_x, k_p = jax.random.split(key)
    x = jax.random.normal(k_x, (B, T, I), jnp.float32)

    params = init_params(k_p, I, H, O)                 # logical (PyTorch-style) params
    kparams = prepare_kernel_params(params, H, O)      # kernel layout (fused / padded)

    out = lstm_model_forward(x, kparams, output_size=O)
    out = jax.block_until_ready(out)

    ref = reference_forward(x, params)
    assert out.shape == (B, O)
    assert jnp.allclose(out, ref, atol=1e-4, rtol=1e-4), (out, ref)

    print("KERNEL_OK")
</pallas_src>

<mosaic_0001>
module attributes {stable_mosaic.version = 11 : i64} {
  func.func @lstm_model_kernel(%arg0: memref<64x1xf32, #tpu.memory_space<vmem>>, %arg1: memref<1x128xf32, #tpu.memory_space<vmem>>, %arg2: memref<32x128xf32, #tpu.memory_space<vmem>>, %arg3: memref<1x128xf32, #tpu.memory_space<vmem>>, %arg4: memref<64x128xf32, #tpu.memory_space<vmem>>, %arg5: memref<1x128xf32, #tpu.memory_space<vmem>>, %arg6: memref<32x128xf32, #tpu.memory_space<vmem>>, %arg7: memref<1x128xf32, #tpu.memory_space<vmem>>, %arg8: memref<128x128xf32, #tpu.memory_space<vmem>>, %arg9: memref<1x128xf32, #tpu.memory_space<vmem>>, %arg10: memref<8x128xf32, #tpu.memory_space<vmem>>) attributes {dimension_semantics = [], scalar_prefetch = 0 : i64, scratch_operands = 0 : i64, tpu.core_type = #tpu.core_type<tc>} {
    %c0 = arith.constant 0 : index
    %c0_0 = arith.constant 0 : index
    %0 = vector.load %arg0[%c0, %c0_0] : memref<64x1xf32, #tpu.memory_space<vmem>>, vector<64x1xf32>
    %c0_1 = arith.constant 0 : index
    %c0_2 = arith.constant 0 : index
    %1 = vector.load %arg1[%c0_1, %c0_2] : memref<1x128xf32, #tpu.memory_space<vmem>>, vector<1x128xf32>
    %cst = arith.constant dense<0.000000e+00> : vector<64x128xf32>
    %2 = tpu.matmul %0, %1, %cst {dimension_numbers = #tpu.dot_dimension_numbers<[1], [0], [0], [1], [0, 0, 1, 1], [], []>} : vector<64x1xf32>, vector<1x128xf32>, vector<64x128xf32> -> vector<64x128xf32>
    %c0_3 = arith.constant 0 : index
    %c0_4 = arith.constant 0 : index
    %3 = vector.load %arg3[%c0_3, %c0_4] : memref<1x128xf32, #tpu.memory_space<vmem>>, vector<1x128xf32>
    %4 = vector.broadcast %3 : vector<1x128xf32> to vector<64x128xf32>
    %5 = arith.addf %2, %4 : vector<64x128xf32>
    %c0_5 = arith.constant 0 : index
    %c0_6 = arith.constant 0 : index
    %6 = vector.load %arg2[%c0_5, %c0_6] : memref<32x128xf32, #tpu.memory_space<vmem>>, vector<32x128xf32>
    %c0_7 = arith.constant 0 : index
    %c0_8 = arith.constant 0 : index
    %7 = vector.load %arg4[%c0_7, %c0_8] : memref<64x128xf32, #tpu.memory_space<vmem>>, vector<64x128xf32>
    %c0_9 = arith.constant 0 : index
    %c0_10 = arith.constant 0 : index
    %8 = vector.load %arg5[%c0_9, %c0_10] : memref<1x128xf32, #tpu.memory_space<vmem>>, vector<1x128xf32>
    %9 = vector.shape_cast %8 : vector<1x128xf32> to vector<1x128xf32>
    %10 = vector.broadcast %9 : vector<1x128xf32> to vector<8x128xf32>
    %cst_11 = arith.constant 0.000000e+00 : f32
    %11 = vector.broadcast %cst_11 : f32 to vector<8x32xf32>
    %12 = vector.extract_strided_slice %5 {offsets = [0, 0], sizes = [8, 128], strides = [1, 1]} : vector<64x128xf32> to vector<8x128xf32>
    %cst_12 = arith.constant dense<0.000000e+00> : vector<8x128xf32>
    %13 = tpu.matmul %11, %6, %cst_12 {dimension_numbers = #tpu.dot_dimension_numbers<[1], [0], [0], [1], [0, 0, 1, 1], [], []>} : vector<8x32xf32>, vector<32x128xf32>, vector<8x128xf32> -> vector<8x128xf32>
    %14 = arith.addf %12, %13 : vector<8x128xf32>
    %15 = arith.negf %14 : vector<8x128xf32>
    %16 = math.exp %15 : vector<8x128xf32>
    %cst_13 = arith.constant 1.000000e+00 : f32
    %17 = vector.broadcast %cst_13 : f32 to vector<8x128xf32>
    %18 = arith.addf %17, %16 : vector<8x128xf32>
    %19 = arith.divf %17, %18 : vector<8x128xf32>
    %20 = math.tanh %14 : vector<8x128xf32>
    %21 = vector.extract_strided_slice %19 {offsets = [0, 0], sizes = [8, 32], strides = [1, 1]} : vector<8x128xf32> to vector<8x32xf32>
    %22 = vector.extract_strided_slice %19 {offsets = [0, 32], sizes = [8, 32], strides = [1, 1]} : vector<8x128xf32> to vector<8x32xf32>
    %23 = vector.extract_strided_slice %20 {offsets = [0, 64], sizes = [8, 32], strides = [1, 1]} : vector<8x128xf32> to vector<8x32xf32>
    %24 = vector.extract_strided_slice %19 {offsets = [0, 96], sizes = [8, 32], strides = [1, 1]} : vector<8x128xf32> to vector<8x32xf32>
    %25 = arith.mulf %22, %11 : vector<8x32xf32>
    %26 = arith.mulf %21, %23 : vector<8x32xf32>
    %27 = arith.addf %25, %26 : vector<8x32xf32>
    %28 = math.tanh %27 : vector<8x32xf32>
    %29 = arith.mulf %24, %28 : vector<8x32xf32>
    %30 = tpu.concatenate %29, %11 in 1 : vector<8x32xf32>, vector<8x32xf32> -> vector<8x64xf32>
    %cst_14 = arith.constant dense<0.000000e+00> : vector<8x128xf32>
    %31 = tpu.matmul %30, %7, %cst_14 {dimension_numbers = #tpu.dot_dimension_numbers<[1], [0], [0], [1], [0, 0, 1, 1], [], []>} : vector<8x64xf32>, vector<64x128xf32>, vector<8x128xf32> -> vector<8x128xf32>
    %32 = arith.addf %31, %10 : vector<8x128xf32>
    %33 = arith.negf %32 : vector<8x128xf32>
    %34 = math.exp %33 : vector<8x128xf32>
    %cst_15 = arith.constant 1.000000e+00 : f32
    %35 = vector.broadcast %cst_15 : f32 to vector<8x128xf32>
    %36 = arith.addf %35, %34 : vector<8x128xf32>
    %37 = arith.divf %35, %36 : vector<8x128xf32>
    %38 = math.tanh %32 : vector<8x128xf32>
    %39 = vector.extract_strided_slice %37 {offsets = [0, 0], sizes = [8, 32], strides = [1, 1]} : vector<8x128xf32> to vector<8x32xf32>
    %40 = vector.extract_strided_slice %37 {offsets = [0, 32], sizes = [8, 32], strides = [1, 1]} : vector<8x128xf32> to vector<8x32xf32>
    %41 = vector.extract_strided_slice %38 {offsets = [0, 64], sizes = [8, 32], strides = [1, 1]} : vector<8x128xf32> to vector<8x32xf32>
    %42 = vector.extract_strided_slice %37 {offsets = [0, 96], sizes = [8, 32], strides = [1, 1]} : vector<8x128xf32> to vector<8x32xf32>
    %43 = arith.mulf %40, %11 : vector<8x32xf32>
    %44 = arith.mulf %39, %41 : vector<8x32xf32>
    %45 = arith.addf %43, %44 : vector<8x32xf32>
    %46 = math.tanh %45 : vector<8x32xf32>
    %47 = arith.mulf %42, %46 : vector<8x32xf32>
    %48 = vector.extract_strided_slice %5 {offsets = [8, 0], sizes = [8, 128], strides = [1, 1]} : vector<64x128xf32> to vector<8x128xf32>
    %cst_16 = arith.constant dense<0.000000e+00> : vector<8x128xf32>
    %49 = tpu.matmul %29, %6, %cst_16 {dimension_numbers = #tpu.dot_dimension_numbers<[1], [0], [0], [1], [0, 0, 1, 1], [], []>} : vector<8x32xf32>, vector<32x128xf32>, vector<8x128xf32> -> vector<8x128xf32>
    %50 = arith.addf %48, %49 : vector<8x128xf32>
    %51 = arith.negf %50 : vector<8x128xf32>
    %52 = math.exp %51 : vector<8x128xf32>
    %cst_17 = arith.constant 1.000000e+00 : f32
    %53 = vector.broadcast %cst_17 : f32 to vector<8x128xf32>
    %54 = arith.addf %53, %52 : vector<8x128xf32>
    %55 = arith.divf %53, %54 : vector<8x128xf32>
    %56 = math.tanh %50 : vector<8x128xf32>
    %57 = vector.extract_strided_slice %55 {offsets = [0, 0], sizes = [8, 32], strides = [1, 1]} : vector<8x128xf32> to vector<8x32xf32>
    %58 = vector.extract_strided_slice %55 {offsets = [0, 32], sizes = [8, 32], strides = [1, 1]} : vector<8x128xf32> to vector<8x32xf32>
    %59 = vector.extract_strided_slice %56 {offsets = [0, 64], sizes = [8, 32], strides = [1, 1]} : vector<8x128xf32> to vector<8x32xf32>
    %60 = vector.extract_strided_slice %55 {offsets = [0, 96], sizes = [8, 32], strides = [1, 1]} : vector<8x128xf32> to vector<8x32xf32>
    %61 = arith.mulf %58, %27 : vector<8x32xf32>
    %62 = arith.mulf %57, %59 : vector<8x32xf32>
    %63 = arith.addf %61, %62 : vector<8x32xf32>
    %64 = math.tanh %63 : vector<8x32xf32>
    %65 = arith.mulf %60, %64 : vector<8x32xf32>
    %66 = tpu.concatenate %65, %47 in 1 : vector<8x32xf32>, vector<8x32xf32> -> vector<8x64xf32>
    %cst_18 = arith.constant dense<0.000000e+00> : vector<8x128xf32>
    %67 = tpu.matmul %66, %7, %cst_18 {dimension_numbers = #tpu.dot_dimension_numbers<[1], [0], [0], [1], [0, 0, 1, 1], [], []>} : vector<8x64xf32>, vector<64x128xf32>, vector<8x128xf32> -> vector<8x128xf32>
    %68 = arith.addf %67, %10 : vector<8x128xf32>
    %69 = arith.negf %68 : vector<8x128xf32>
    %70 = math.exp %69 : vector<8x128xf32>
    %cst_19 = arith.constant 1.000000e+00 : f32
    %71 = vector.broadcast %cst_19 : f32 to vector<8x128xf32>
    %72 = arith.addf %71, %70 : vector<8x128xf32>
    %73 = arith.divf %71, %72 : vector<8x128xf32>
    %74 = math.tanh %68 : vector<8x128xf32>
    %75 = vector.extract_strided_slice %73 {offsets = [0, 0], sizes = [8, 32], strides = [1, 1]} : vector<8x128xf32> to vector<8x32xf32>
    %76 = vector.extract_strided_slice %73 {offsets = [0, 32], sizes = [8, 32], strides = [1, 1]} : vector<8x128xf32> to vector<8x32xf32>
    %77 = vector.extract_strided_slice %74 {offsets = [0, 64], sizes = [8, 32], strides = [1, 1]} : vector<8x128xf32> to vector<8x32xf32>
    %78 = vector.extract_strided_slice %73 {offsets = [0, 96], sizes = [8, 32], strides = [1, 1]} : vector<8x128xf32> to vector<8x32xf32>
    %79 = arith.mulf %76, %45 : vector<8x32xf32>
    %80 = arith.mulf %75, %77 : vector<8x32xf32>
    %81 = arith.addf %79, %80 : vector<8x32xf32>
    %82 = math.tanh %81 : vector<8x32xf32>
    %83 = arith.mulf %78, %82 : vector<8x32xf32>
    %84 = vector.extract_strided_slice %5 {offsets = [16, 0], sizes = [8, 128], strides = [1, 1]} : vector<64x128xf32> to vector<8x128xf32>
    %cst_20 = arith.constant dense<0.000000e+00> : vector<8x128xf32>
    %85 = tpu.matmul %65, %6, %cst_20 {dimension_numbers = #tpu.dot_dimension_numbers<[1], [0], [0], [1], [0, 0, 1, 1], [], []>} : vector<8x32xf32>, vector<32x128xf32>, vector<8x128xf32> -> vector<8x128xf32>
    %86 = arith.addf %84, %85 : vector<8x128xf32>
    %87 = arith.negf %86 : vector<8x128xf32>
    %88 = math.exp %87 : vector<8x128xf32>
    %cst_21 = arith.constant 1.000000e+00 : f32
    %89 = vector.broadcast %cst_21 : f32 to vector<8x128xf32>
    %90 = arith.addf %89, %88 : vector<8x128xf32>
    %91 = arith.divf %89, %90 : vector<8x128xf32>
    %92 = math.tanh %86 : vector<8x128xf32>
    %93 = vector.extract_strided_slice %91 {offsets = [0, 0], sizes = [8, 32], strides = [1, 1]} : vector<8x128xf32> to vector<8x32xf32>
    %94 = vector.extract_strided_slice %91 {offsets = [0, 32], sizes = [8, 32], strides = [1, 1]} : vector<8x128xf32> to vector<8x32xf32>
    %95 = vector.extract_strided_slice %92 {offsets = [0, 64], sizes = [8, 32], strides = [1, 1]} : vector<8x128xf32> to vector<8x32xf32>
    %96 = vector.extract_strided_slice %91 {offsets = [0, 96], sizes = [8, 32], strides = [1, 1]} : vector<8x128xf32> to vector<8x32xf32>
    %97 = arith.mulf %94, %63 : vector<8x32xf32>
    %98 = arith.mulf %93, %95 : vector<8x32xf32>
    %99 = arith.addf %97, %98 : vector<8x32xf32>
    %100 = math.tanh %99 : vector<8x32xf32>
    %101 = arith.mulf %96, %100 : vector<8x32xf32>
    %102 = tpu.concatenate %101, %83 in 1 : vector<8x32xf32>, vector<8x32xf32> -> vector<8x64xf32>
    %cst_22 = arith.constant dense<0.000000e+00> : vector<8x128xf32>
    %103 = tpu.matmul %102, %7, %cst_22 {dimension_numbers = #tpu.dot_dimension_numbers<[1], [0], [0], [1], [0, 0, 1, 1], [], []>} : vector<8x64xf32>, vector<64x128xf32>, vector<8x128xf32> -> vector<8x128xf32>
    %104 = arith.addf %103, %10 : vector<8x128xf32>
    %105 = arith.negf %104 : vector<8x128xf32>
    %106 = math.exp %105 : vector<8x128xf32>
    %cst_23 = arith.constant 1.000000e+00 : f32
    %107 = vector.broadcast %cst_23 : f32 to vector<8x128xf32>
    %108 = arith.addf %107, %106 : vector<8x128xf32>
    %109 = arith.divf %107, %108 : vector<8x128xf32>
    %110 = math.tanh %104 : vector<8x128xf32>
    %111 = vector.extract_strided_slice %109 {offsets = [0, 0], sizes = [8, 32], strides = [1, 1]} : vector<8x128xf32> to vector<8x32xf32>
    %112 = vector.extract_strided_slice %109 {offsets = [0, 32], sizes = [8, 32], strides = [1, 1]} : vector<8x128xf32> to vector<8x32xf32>
    %113 = vector.extract_strided_slice %110 {offsets = [0, 64], sizes = [8, 32], strides = [1, 1]} : vector<8x128xf32> to vector<8x32xf32>
    %114 = vector.extract_strided_slice %109 {offsets = [0, 96], sizes = [8, 32], strides = [1, 1]} : vector<8x128xf32> to vector<8x32xf32>
    %115 = arith.mulf %112, %81 : vector<8x32xf32>
    %116 = arith.mulf %111, %113 : vector<8x32xf32>
    %117 = arith.addf %115, %116 : vector<8x32xf32>
    %118 = math.tanh %117 : vector<8x32xf32>
    %119 = arith.mulf %114, %118 : vector<8x32xf32>
    %120 = vector.extract_strided_slice %5 {offsets = [24, 0], sizes = [8, 128], strides = [1, 1]} : vector<64x128xf32> to vector<8x128xf32>
    %cst_24 = arith.constant dense<0.000000e+00> : vector<8x128xf32>
    %121 = tpu.matmul %101, %6, %cst_24 {dimension_numbers = #tpu.dot_dimension_numbers<[1], [0], [0], [1], [0, 0, 1, 1], [], []>} : vector<8x32xf32>, vector<32x128xf32>, vector<8x128xf32> -> vector<8x128xf32>
    %122 = arith.addf %120, %121 : vector<8x128xf32>
    %123 = arith.negf %122 : vector<8x128xf32>
    %124 = math.exp %123 : vector<8x128xf32>
    %cst_25 = arith.constant 1.000000e+00 : f32
    %125 = vector.broadcast %cst_25 : f32 to vector<8x128xf32>
    %126 = arith.addf %125, %124 : vector<8x128xf32>
    %127 = arith.divf %125, %126 : vector<8x128xf32>
    %128 = math.tanh %122 : vector<8x128xf32>
    %129 = vector.extract_strided_slice %127 {offsets = [0, 0], sizes = [8, 32], strides = [1, 1]} : vector<8x128xf32> to vector<8x32xf32>
    %130 = vector.extract_strided_slice %127 {offsets = [0, 32], sizes = [8, 32], strides = [1, 1]} : vector<8x128xf32> to vector<8x32xf32>
    %131 = vector.extract_strided_slice %128 {offsets = [0, 64], sizes = [8, 32], strides = [1, 1]} : vector<8x128xf32> to vector<8x32xf32>
    %132 = vector.extract_strided_slice %127 {offsets = [0, 96], sizes = [8, 32], strides = [1, 1]} : vector<8x128xf32> to vector<8x32xf32>
    %133 = arith.mulf %130, %99 : vector<8x32xf32>
    %134 = arith.mulf %129, %131 : vector<8x32xf32>
    %135 = arith.addf %133, %134 : vector<8x32xf32>
    %136 = math.tanh %135 : vector<8x32xf32>
    %137 = arith.mulf %132, %136 : vector<8x32xf32>
    %138 = tpu.concatenate %137, %119 in 1 : vector<8x32xf32>, vector<8x32xf32> -> vector<8x64xf32>
    %cst_26 = arith.constant dense<0.000000e+00> : vector<8x128xf32>
    %139 = tpu.matmul %138, %7, %cst_26 {dimension_numbers = #tpu.dot_dimension_numbers<[1], [0], [0], [1], [0, 0, 1, 1], [], []>} : vector<8x64xf32>, vector<64x128xf32>, vector<8x128xf32> -> vector<8x128xf32>
    %140 = arith.addf %139, %10 : vector<8x128xf32>
    %141 = arith.negf %140 : vector<8x128xf32>
    %142 = math.exp %141 : vector<8x128xf32>
    %cst_27 = arith.constant 1.000000e+00 : f32
    %143 = vector.broadcast %cst_27 : f32 to vector<8x128xf32>
    %144 = arith.addf %143, %142 : vector<8x128xf32>
    %145 = arith.divf %143, %144 : vector<8x128xf32>
    %146 = math.tanh %140 : vector<8x128xf32>
    %147 = vector.extract_strided_slice %145 {offsets = [0, 0], sizes = [8, 32], strides = [1, 1]} : vector<8x128xf32> to vector<8x32xf32>
    %148 = vector.extract_strided_slice %145 {offsets = [0, 32], sizes = [8, 32], strides = [1, 1]} : vector<8x128xf32> to vector<8x32xf32>
    %149 = vector.extract_strided_slice %146 {offsets = [0, 64], sizes = [8, 32], strides = [1, 1]} : vector<8x128xf32> to vector<8x32xf32>
    %150 = vector.extract_strided_slice %145 {offsets = [0, 96], sizes = [8, 32], strides = [1, 1]} : vector<8x128xf32> to vector<8x32xf32>
    %151 = arith.mulf %148, %117 : vector<8x32xf32>
    %152 = arith.mulf %147, %149 : vector<8x32xf32>
    %153 = arith.addf %151, %152 : vector<8x32xf32>
    %154 = math.tanh %153 : vector<8x32xf32>
    %155 = arith.mulf %150, %154 : vector<8x32xf32>
    %156 = vector.extract_strided_slice %5 {offsets = [32, 0], sizes = [8, 128], strides = [1, 1]} : vector<64x128xf32> to vector<8x128xf32>
    %cst_28 = arith.constant dense<0.000000e+00> : vector<8x128xf32>
    %157 = tpu.matmul %137, %6, %cst_28 {dimension_numbers = #tpu.dot_dimension_numbers<[1], [0], [0], [1], [0, 0, 1, 1], [], []>} : vector<8x32xf32>, vector<32x128xf32>, vector<8x128xf32> -> vector<8x128xf32>
    %158 = arith.addf %156, %157 : vector<8x128xf32>
    %159 = arith.negf %158 : vector<8x128xf32>
    %160 = math.exp %159 : vector<8x128xf32>
    %cst_29 = arith.constant 1.000000e+00 : f32
    %161 = vector.broadcast %cst_29 : f32 to vector<8x128xf32>
    %162 = arith.addf %161, %160 : vector<8x128xf32>
    %163 = arith.divf %161, %162 : vector<8x128xf32>
    %164 = math.tanh %158 : vector<8x128xf32>
    %165 = vector.extract_strided_slice %163 {offsets = [0, 0], sizes = [8, 32], strides = [1, 1]} : vector<8x128xf32> to vector<8x32xf32>
    %166 = vector.extract_strided_slice %163 {offsets = [0, 32], sizes = [8, 32], strides = [1, 1]} : vector<8x128xf32> to vector<8x32xf32>
    %167 = vector.extract_strided_slice %164 {offsets = [0, 64], sizes = [8, 32], strides = [1, 1]} : vector<8x128xf32> to vector<8x32xf32>
    %168 = vector.extract_strided_slice %163 {offsets = [0, 96], sizes = [8, 32], strides = [1, 1]} : vector<8x128xf32> to vector<8x32xf32>
    %169 = arith.mulf %166, %135 : vector<8x32xf32>
    %170 = arith.mulf %165, %167 : vector<8x32xf32>
    %171 = arith.addf %169, %170 : vector<8x32xf32>
    %172 = math.tanh %171 : vector<8x32xf32>
    %173 = arith.mulf %168, %172 : vector<8x32xf32>
    %174 = tpu.concatenate %173, %155 in 1 : vector<8x32xf32>, vector<8x32xf32> -> vector<8x64xf32>
    %cst_30 = arith.constant dense<0.000000e+00> : vector<8x128xf32>
    %175 = tpu.matmul %174, %7, %cst_30 {dimension_numbers = #tpu.dot_dimension_numbers<[1], [0], [0], [1], [0, 0, 1, 1], [], []>} : vector<8x64xf32>, vector<64x128xf32>, vector<8x128xf32> -> vector<8x128xf32>
    %176 = arith.addf %175, %10 : vector<8x128xf32>
    %177 = arith.negf %176 : vector<8x128xf32>
    %178 = math.exp %177 : vector<8x128xf32>
    %cst_31 = arith.constant 1.000000e+00 : f32
    %179 = vector.broadcast %cst_31 : f32 to vector<8x128xf32>
    %180 = arith.addf %179, %178 : vector<8x128xf32>
    %181 = arith.divf %179, %180 : vector<8x128xf32>
    %182 = math.tanh %176 : vector<8x128xf32>
    %183 = vector.extract_strided_slice %181 {offsets = [0, 0], sizes = [8, 32], strides = [1, 1]} : vector<8x128xf32> to vector<8x32xf32>
    %184 = vector.extract_strided_slice %181 {offsets = [0, 32], sizes = [8, 32], strides = [1, 1]} : vector<8x128xf32> to vector<8x32xf32>
    %185 = vector.extract_strided_slice %182 {offsets = [0, 64], sizes = [8, 32], strides = [1, 1]} : vector<8x128xf32> to vector<8x32xf32>
    %186 = vector.extract_strided_slice %181 {offsets = [0, 96], sizes = [8, 32], strides = [1, 1]} : vector<8x128xf32> to vector<8x32xf32>
    %187 = arith.mulf %184, %153 : vector<8x32xf32>
    %188 = arith.mulf %183, %185 : vector<8x32xf32>
    %189 = arith.addf %187, %188 : vector<8x32xf32>
    %190 = math.tanh %189 : vector<8x32xf32>
    %191 = arith.mulf %186, %190 : vector<8x32xf32>
    %192 = vector.extract_strided_slice %5 {offsets = [40, 0], sizes = [8, 128], strides = [1, 1]} : vector<64x128xf32> to vector<8x128xf32>
    %cst_32 = arith.constant dense<0.000000e+00> : vector<8x128xf32>
    %193 = tpu.matmul %173, %6, %cst_32 {dimension_numbers = #tpu.dot_dimension_numbers<[1], [0], [0], [1], [0, 0, 1, 1], [], []>} : vector<8x32xf32>, vector<32x128xf32>, vector<8x128xf32> -> vector<8x128xf32>
    %194 = arith.addf %192, %193 : vector<8x128xf32>
    %195 = arith.negf %194 : vector<8x128xf32>
    %196 = math.exp %195 : vector<8x128xf32>
    %cst_33 = arith.constant 1.000000e+00 : f32
    %197 = vector.broadcast %cst_33 : f32 to vector<8x128xf32>
    %198 = arith.addf %197, %196 : vector<8x128xf32>
    %199 = arith.divf %197, %198 : vector<8x128xf32>
    %200 = math.tanh %194 : vector<8x128xf32>
    %201 = vector.extract_strided_slice %199 {offsets = [0, 0], sizes = [8, 32], strides = [1, 1]} : vector<8x128xf32> to vector<8x32xf32>
    %202 = vector.extract_strided_slice %199 {offsets = [0, 32], sizes = [8, 32], strides = [1, 1]} : vector<8x128xf32> to vector<8x32xf32>
    %203 = vector.extract_strided_slice %200 {offsets = [0, 64], sizes = [8, 32], strides = [1, 1]} : vector<8x128xf32> to vector<8x32xf32>
    %204 = vector.extract_strided_slice %199 {offsets = [0, 96], sizes = [8, 32], strides = [1, 1]} : vector<8x128xf32> to vector<8x32xf32>
    %205 = arith.mulf %202, %171 : vector<8x32xf32>
    %206 = arith.mulf %201, %203 : vector<8x32xf32>
    %207 = arith.addf %205, %206 : vector<8x32xf32>
    %208 = math.tanh %207 : vector<8x32xf32>
    %209 = arith.mulf %204, %208 : vector<8x32xf32>
    %210 = tpu.concatenate %209, %191 in 1 : vector<8x32xf32>, vector<8x32xf32> -> vector<8x64xf32>
    %cst_34 = arith.constant dense<0.000000e+00> : vector<8x128xf32>
    %211 = tpu.matmul %210, %7, %cst_34 {dimension_numbers = #tpu.dot_dimension_numbers<[1], [0], [0], [1], [0, 0, 1, 1], [], []>} : vector<8x64xf32>, vector<64x128xf32>, vector<8x128xf32> -> vector<8x128xf32>
    %212 = arith.addf %211, %10 : vector<8x128xf32>
    %213 = arith.negf %212 : vector<8x128xf32>
    %214 = math.exp %213 : vector<8x128xf32>
    %cst_35 = arith.constant 1.000000e+00 : f32
    %215 = vector.broadcast %cst_35 : f32 to vector<8x128xf32>
    %216 = arith.addf %215, %214 : vector<8x128xf32>
    %217 = arith.divf %215, %216 : vector<8x128xf32>
    %218 = math.tanh %212 : vector<8x128xf32>
    %219 = vector.extract_strided_slice %217 {offsets = [0, 0], sizes = [8, 32], strides = [1, 1]} : vector<8x128xf32> to vector<8x32xf32>
    %220 = vector.extract_strided_slice %217 {offsets = [0, 32], sizes = [8, 32], strides = [1, 1]} : vector<8x128xf32> to vector<8x32xf32>
    %221 = vector.extract_strided_slice %218 {offsets = [0, 64], sizes = [8, 32], strides = [1, 1]} : vector<8x128xf32> to vector<8x32xf32>
    %222 = vector.extract_strided_slice %217 {offsets = [0, 96], sizes = [8, 32], strides = [1, 1]} : vector<8x128xf32> to vector<8x32xf32>
    %223 = arith.mulf %220, %189 : vector<8x32xf32>
    %224 = arith.mulf %219, %221 : vector<8x32xf32>
    %225 = arith.addf %223, %224 : vector<8x32xf32>
    %226 = math.tanh %225 : vector<8x32xf32>
    %227 = arith.mulf %222, %226 : vector<8x32xf32>
    %228 = vector.extract_strided_slice %5 {offsets = [48, 0], sizes = [8, 128], strides = [1, 1]} : vector<64x128xf32> to vector<8x128xf32>
    %cst_36 = arith.constant dense<0.000000e+00> : vector<8x128xf32>
    %229 = tpu.matmul %209, %6, %cst_36 {dimension_numbers = #tpu.dot_dimension_numbers<[1], [0], [0], [1], [0, 0, 1, 1], [], []>} : vector<8x32xf32>, vector<32x128xf32>, vector<8x128xf32> -> vector<8x128xf32>
    %230 = arith.addf %228, %229 : vector<8x128xf32>
    %231 = arith.negf %230 : vector<8x128xf32>
    %232 = math.exp %231 : vector<8x128xf32>
    %cst_37 = arith.constant 1.000000e+00 : f32
    %233 = vector.broadcast %cst_37 : f32 to vector<8x128xf32>
    %234 = arith.addf %233, %232 : vector<8x128xf32>
    %235 = arith.divf %233, %234 : vector<8x128xf32>
    %236 = math.tanh %230 : vector<8x128xf32>
    %237 = vector.extract_strided_slice %235 {offsets = [0, 0], sizes = [8, 32], strides = [1, 1]} : vector<8x128xf32> to vector<8x32xf32>
    %238 = vector.extract_strided_slice %235 {offsets = [0, 32], sizes = [8, 32], strides = [1, 1]} : vector<8x128xf32> to vector<8x32xf32>
    %239 = vector.extract_strided_slice %236 {offsets = [0, 64], sizes = [8, 32], strides = [1, 1]} : vector<8x128xf32> to vector<8x32xf32>
    %240 = vector.extract_strided_slice %235 {offsets = [0, 96], sizes = [8, 32], strides = [1, 1]} : vector<8x128xf32> to vector<8x32xf32>
    %241 = arith.mulf %238, %207 : vector<8x32xf32>
    %242 = arith.mulf %237, %239 : vector<8x32xf32>
    %243 = arith.addf %241, %242 : vector<8x32xf32>
    %244 = math.tanh %243 : vector<8x32xf32>
    %245 = arith.mulf %240, %244 : vector<8x32xf32>
    %246 = tpu.concatenate %245, %227 in 1 : vector<8x32xf32>, vector<8x32xf32> -> vector<8x64xf32>
    %cst_38 = arith.constant dense<0.000000e+00> : vector<8x128xf32>
    %247 = tpu.matmul %246, %7, %cst_38 {dimension_numbers = #tpu.dot_dimension_numbers<[1], [0], [0], [1], [0, 0, 1, 1], [], []>} : vector<8x64xf32>, vector<64x128xf32>, vector<8x128xf32> -> vector<8x128xf32>
    %248 = arith.addf %247, %10 : vector<8x128xf32>
    %249 = arith.negf %248 : vector<8x128xf32>
    %250 = math.exp %249 : vector<8x128xf32>
    %cst_39 = arith.constant 1.000000e+00 : f32
    %251 = vector.broadcast %cst_39 : f32 to vector<8x128xf32>
    %252 = arith.addf %251, %250 : vector<8x128xf32>
    %253 = arith.divf %251, %252 : vector<8x128xf32>
    %254 = math.tanh %248 : vector<8x128xf32>
    %255 = vector.extract_strided_slice %253 {offsets = [0, 0], sizes = [8, 32], strides = [1, 1]} : vector<8x128xf32> to vector<8x32xf32>
    %256 = vector.extract_strided_slice %253 {offsets = [0, 32], sizes = [8, 32], strides = [1, 1]} : vector<8x128xf32> to vector<8x32xf32>
    %257 = vector.extract_strided_slice %254 {offsets = [0, 64], sizes = [8, 32], strides = [1, 1]} : vector<8x128xf32> to vector<8x32xf32>
    %258 = vector.extract_strided_slice %253 {offsets = [0, 96], sizes = [8, 32], strides = [1, 1]} : vector<8x128xf32> to vector<8x32xf32>
    %259 = arith.mulf %256, %225 : vector<8x32xf32>
    %260 = arith.mulf %255, %257 : vector<8x32xf32>
    %261 = arith.addf %259, %260 : vector<8x32xf32>
    %262 = math.tanh %261 : vector<8x32xf32>
    %263 = arith.mulf %258, %262 : vector<8x32xf32>
    %264 = vector.extract_strided_slice %5 {offsets = [56, 0], sizes = [8, 128], strides = [1, 1]} : vector<64x128xf32> to vector<8x128xf32>
    %cst_40 = arith.constant dense<0.000000e+00> : vector<8x128xf32>
    %265 = tpu.matmul %245, %6, %cst_40 {dimension_numbers = #tpu.dot_dimension_numbers<[1], [0], [0], [1], [0, 0, 1, 1], [], []>} : vector<8x32xf32>, vector<32x128xf32>, vector<8x128xf32> -> vector<8x128xf32>
    %266 = arith.addf %264, %265 : vector<8x128xf32>
    %267 = arith.negf %266 : vector<8x128xf32>
    %268 = math.exp %267 : vector<8x128xf32>
    %cst_41 = arith.constant 1.000000e+00 : f32
    %269 = vector.broadcast %cst_41 : f32 to vector<8x128xf32>
    %270 = arith.addf %269, %268 : vector<8x128xf32>
    %271 = arith.divf %269, %270 : vector<8x128xf32>
    %272 = math.tanh %266 : vector<8x128xf32>
    %273 = vector.extract_strided_slice %271 {offsets = [0, 0], sizes = [8, 32], strides = [1, 1]} : vector<8x128xf32> to vector<8x32xf32>
    %274 = vector.extract_strided_slice %271 {offsets = [0, 32], sizes = [8, 32], strides = [1, 1]} : vector<8x128xf32> to vector<8x32xf32>
    %275 = vector.extract_strided_slice %272 {offsets = [0, 64], sizes = [8, 32], strides = [1, 1]} : vector<8x128xf32> to vector<8x32xf32>
    %276 = vector.extract_strided_slice %271 {offsets = [0, 96], sizes = [8, 32], strides = [1, 1]} : vector<8x128xf32> to vector<8x32xf32>
    %277 = arith.mulf %274, %243 : vector<8x32xf32>
    %278 = arith.mulf %273, %275 : vector<8x32xf32>
    %279 = arith.addf %277, %278 : vector<8x32xf32>
    %280 = math.tanh %279 : vector<8x32xf32>
    %281 = arith.mulf %276, %280 : vector<8x32xf32>
    %282 = tpu.concatenate %281, %263 in 1 : vector<8x32xf32>, vector<8x32xf32> -> vector<8x64xf32>
    %cst_42 = arith.constant dense<0.000000e+00> : vector<8x128xf32>
    %283 = tpu.matmul %282, %7, %cst_42 {dimension_numbers = #tpu.dot_dimension_numbers<[1], [0], [0], [1], [0, 0, 1, 1], [], []>} : vector<8x64xf32>, vector<64x128xf32>, vector<8x128xf32> -> vector<8x128xf32>
    %284 = arith.addf %283, %10 : vector<8x128xf32>
    %285 = arith.negf %284 : vector<8x128xf32>
    %286 = math.exp %285 : vector<8x128xf32>
    %cst_43 = arith.constant 1.000000e+00 : f32
    %287 = vector.broadcast %cst_43 : f32 to vector<8x128xf32>
    %288 = arith.addf %287, %286 : vector<8x128xf32>
    %289 = arith.divf %287, %288 : vector<8x128xf32>
    %290 = math.tanh %284 : vector<8x128xf32>
    %291 = vector.extract_strided_slice %289 {offsets = [0, 0], sizes = [8, 32], strides = [1, 1]} : vector<8x128xf32> to vector<8x32xf32>
    %292 = vector.extract_strided_slice %289 {offsets = [0, 32], sizes = [8, 32], strides = [1, 1]} : vector<8x128xf32> to vector<8x32xf32>
    %293 = vector.extract_strided_slice %290 {offsets = [0, 64], sizes = [8, 32], strides = [1, 1]} : vector<8x128xf32> to vector<8x32xf32>
    %294 = vector.extract_strided_slice %289 {offsets = [0, 96], sizes = [8, 32], strides = [1, 1]} : vector<8x128xf32> to vector<8x32xf32>
    %295 = arith.mulf %292, %261 : vector<8x32xf32>
    %296 = arith.mulf %291, %293 : vector<8x32xf32>
    %297 = arith.addf %295, %296 : vector<8x32xf32>
    %298 = math.tanh %297 : vector<8x32xf32>
    %299 = arith.mulf %294, %298 : vector<8x32xf32>
    %c0_44 = arith.constant 0 : index
    %c0_45 = arith.constant 0 : index
    %300 = vector.load %arg6[%c0_44, %c0_45] : memref<32x128xf32, #tpu.memory_space<vmem>>, vector<32x128xf32>
    %cst_46 = arith.constant dense<0.000000e+00> : vector<8x128xf32>
    %301 = tpu.matmul %299, %300, %cst_46 {dimension_numbers = #tpu.dot_dimension_numbers<[1], [0], [0], [1], [0, 0, 1, 1], [], []>} : vector<8x32xf32>, vector<32x128xf32>, vector<8x128xf32> -> vector<8x128xf32>
    %c0_47 = arith.constant 0 : index
    %c0_48 = arith.constant 0 : index
    %302 = vector.load %arg7[%c0_47, %c0_48] : memref<1x128xf32, #tpu.memory_space<vmem>>, vector<1x128xf32>
    %303 = vector.broadcast %302 : vector<1x128xf32> to vector<8x128xf32>
    %304 = arith.addf %301, %303 : vector<8x128xf32>
    %cst_49 = arith.constant 0.000000e+00 : f32
    %305 = vector.broadcast %cst_49 : f32 to vector<8x128xf32>
    %306 = arith.maximumf %304, %305 : vector<8x128xf32>
    %c0_50 = arith.constant 0 : index
    %c0_51 = arith.constant 0 : index
    %307 = vector.load %arg8[%c0_50, %c0_51] : memref<128x128xf32, #tpu.memory_space<vmem>>, vector<128x128xf32>
    %cst_52 = arith.constant dense<0.000000e+00> : vector<8x128xf32>
    %308 = tpu.matmul %306, %307, %cst_52 {dimension_numbers = #tpu.dot_dimension_numbers<[1], [0], [0], [1], [0, 0, 1, 1], [], []>} : vector<8x128xf32>, vector<128x128xf32>, vector<8x128xf32> -> vector<8x128xf32>
    %c0_53 = arith.constant 0 : index
    %c0_54 = arith.constant 0 : index
    %309 = vector.load %arg9[%c0_53, %c0_54] : memref<1x128xf32, #tpu.memory_space<vmem>>, vector<1x128xf32>
    %310 = vector.broadcast %309 : vector<1x128xf32> to vector<8x128xf32>
    %311 = arith.addf %308, %310 : vector<8x128xf32>
    %c0_55 = arith.constant 0 : index
    %c0_56 = arith.constant 0 : index
    %312 = vector.load %arg10[%c0_55, %c0_56] : memref<8x128xf32, #tpu.memory_space<vmem>>, vector<8x128xf32>
    tpu.vector_store %arg10[%c0_55, %c0_56], %311 {strides = array<i32>} : memref<8x128xf32, #tpu.memory_space<vmem>>, vector<8x128xf32>,
    return
  }
}

</mosaic_0001>

<llo_original>
// kernel: lstm_model_forward.1
$region0: #{lstm_model_forward.1}
  #allocation0 [shape = 'u32[]', space=smem, size = 0x4, offset = 0x4, fixed_abs, tag = 'smem constant byte address 0x4 - core index']
  #allocation1 [shape = 'u32[72,128]{1,0:T(1,128)}', space=vmem, size = 0x9000, scoped, tag = 'internal scratch']
  %s0 = inlined_call_operand.vmem [shape: f32[64,1], index: 0, kind: input, shape index: {}]
  %s1 = inlined_call_operand.vmem [shape: f32[1,128], index: 1, kind: input, shape index: {}]
  %s2 = inlined_call_operand.vmem [shape: f32[32,128], index: 2, kind: input, shape index: {}]
  %s3 = inlined_call_operand.vmem [shape: f32[1,128], index: 3, kind: input, shape index: {}]
  %s4 = inlined_call_operand.vmem [shape: f32[64,128], index: 4, kind: input, shape index: {}]
  %s5 = inlined_call_operand.vmem [shape: f32[1,128], index: 5, kind: input, shape index: {}]
  %s6 = inlined_call_operand.hbm [shape: f32[32,128], index: 6, kind: input, shape index: {}]
  %s7 = inlined_call_operand.vmem [shape: f32[1,128], index: 7, kind: input, shape index: {}]
  %s8 = inlined_call_operand.hbm [shape: f32[128,128], index: 8, kind: input, shape index: {}]
  %s9 = inlined_call_operand.vmem [shape: f32[1,128], index: 9, kind: input, shape index: {}]
  %s10 = inlined_call_operand.vmem [shape: f32[8,128], index: 10, kind: output, shape index: {}]
  %s11 = sld [smem:[#allocation0]]
  $region58: #{lstm_model_forward.1} parent=0
    _
  %s13 = ssub.s32 1, %s11
  %s14 = scalar_select 0, %s13, %s11
  $region1: #{lstm_model_forward.1} parent=0
    #allocation2 [shape = 'u8[16384]{0}', space=vmem, size = 0x4000, scoped, tag = 'input window, operand 6, single buffered']
    #allocation3 [shape = 's32[1]{0}', space=sflag, size = 0x4, scoped, tag = 'scoped memory for lstm_model_forward.1']
    #allocation4 [shape = 'u8[65536]{0}', space=vmem, size = 0x10000, scoped, tag = 'input window, operand 8, single buffered']
    #allocation5 [shape = 's32[1]{0}', space=sflag, size = 0x4, scoped, tag = 'scoped memory for lstm_model_forward.1']
    %15 = vsyncpa [#allocation3], 0
    %16 = vsyncpa [#allocation5], 0
    // Predicated region
    $region2: #{lstm_model_forward.1} parent=1 // pred_check
      _
    $region3: #{lstm_model_forward.1} parent=1 // pred_check_branch
      %18 = sbr.rel (0) target = $region5
    $region4: #{lstm_model_forward.1} parent=1 // pred_region
      _
    $region5: #{lstm_model_forward.1} parent=1 // pred_fallthru
      _
    // Predicated region
    $region6: #{lstm_model_forward.1} parent=1 // pred_check
      _
    $region7: #{lstm_model_forward.1} parent=1 // pred_check_branch
      %20 = sbr.rel (0) target = $region9
    $region8: #{lstm_model_forward.1} parent=1 // pred_region
      _
    $region9: #{lstm_model_forward.1} parent=1 // pred_fallthru
      _
    // Predicated region
    $region10: #{lstm_model_forward.1} parent=1 // pred_check
      _
    $region11: #{lstm_model_forward.1} parent=1 // pred_check_branch
      %22 = sbr.rel (0) target = $region13
    $region12: #{lstm_model_forward.1} parent=1 // pred_region
      _
    $region13: #{lstm_model_forward.1} parent=1 // pred_fallthru
      _
    // Predicated region
    $region14: #{lstm_model_forward.1} parent=1 // pred_check
      _
    $region15: #{lstm_model_forward.1} parent=1 // pred_check_branch
      %24 = sbr.rel (0) target = $region17
    $region16: #{lstm_model_forward.1} parent=1 // pred_region
      _
    $region17: #{lstm_model_forward.1} parent=1 // pred_fallthru
      _
    // Predicated region
    $region18: #{lstm_model_forward.1} parent=1 // pred_check
      _
    $region19: #{lstm_model_forward.1} parent=1 // pred_check_branch
      %26 = sbr.rel (0) target = $region21
    $region20: #{lstm_model_forward.1} parent=1 // pred_region
      _
    $region21: #{lstm_model_forward.1} parent=1 // pred_fallthru
      _
    // Predicated region
    $region22: #{lstm_model_forward.1} parent=1 // pred_check
      _
    $region23: #{lstm_model_forward.1} parent=1 // pred_check_branch
      %28 = sbr.rel (0) target = $region25
    $region24: #{lstm_model_forward.1} parent=1 // pred_region
      _
    $region25: #{lstm_model_forward.1} parent=1 // pred_fallthru
      _
    // Predicated region
    $region26: #{lstm_model_forward.1} parent=1 // pred_check
      _
    $region27: #{lstm_model_forward.1} parent=1 // pred_check_branch
      %30 = sbr.rel (0) target = $region29
    $region28: #{lstm_model_forward.1} parent=1 // pred_region
      %32 = vsyncadd [#allocation3], 0
      %s33 = sshll.u32 %s6, 4
      %s34 = int_to_ptr.hbm [resolvable:$true] %s33
      %s35 = sshll.u32 [#allocation2], 4
      %s36 = int_to_ptr.vmem [resolvable:$true] %s35
      %41 = dma.hbm_to_vmem [thread:$0]  %s34, 512, %s36, [#allocation3], 128, 128, 8
    $region29: #{lstm_model_forward.1} parent=1 // pred_fallthru
      _
    // Predicated region
    $region30: #{lstm_model_forward.1} parent=1 // pred_check
      _
    $region31: #{lstm_model_forward.1} parent=1 // pred_check_branch
      %43 = sbr.rel (0) target = $region33
    $region32: #{lstm_model_forward.1} parent=1 // pred_region
      _
    $region33: #{lstm_model_forward.1} parent=1 // pred_fallthru
      _
    // Predicated region
    $region34: #{lstm_model_forward.1} parent=1 // pred_check
      _
    $region35: #{lstm_model_forward.1} parent=1 // pred_check_branch
      %45 = sbr.rel (0) target = $region37
    $region36: #{lstm_model_forward.1} parent=1 // pred_region
      %47 = vsyncadd [#allocation5], 0
      %s48 = sshll.u32 %s8, 4
      %s49 = int_to_ptr.hbm [resolvable:$true] %s48
      %s50 = sshll.u32 [#allocation4], 4
      %s51 = int_to_ptr.vmem [resolvable:$true] %s50
      %56 = dma.hbm_to_vmem [thread:$0]  %s49, 2048, %s51, [#allocation5], 128, 128, 8
    $region37: #{lstm_model_forward.1} parent=1 // pred_fallthru
      _
    // Predicated region
    $region38: #{lstm_model_forward.1} parent=1 // pred_check
      _
    $region39: #{lstm_model_forward.1} parent=1 // pred_check_branch
      %58 = sbr.rel (0) target = $region41
    $region40: #{lstm_model_forward.1} parent=1 // pred_region
      _
    $region41: #{lstm_model_forward.1} parent=1 // pred_fallthru
      _
    // Predicated region
    $region42: #{lstm_model_forward.1} parent=1 // pred_check
      _
    $region43: #{lstm_model_forward.1} parent=1 // pred_check_branch
      %60 = sbr.rel (0) target = $region45
    $region44: #{lstm_model_forward.1} parent=1 // pred_region
      %62 = dma.done [#allocation3], 512
    $region45: #{lstm_model_forward.1} parent=1 // pred_fallthru
      _
    // Predicated region
    $region46: #{lstm_model_forward.1} parent=1 // pred_check
      _
    $region47: #{lstm_model_forward.1} parent=1 // pred_check_branch
      %64 = sbr.rel (0) target = $region49
    $region48: #{lstm_model_forward.1} parent=1 // pred_region
      %66 = dma.done [#allocation5], 2048
    $region49: #{lstm_model_forward.1} parent=1 // pred_fallthru
      _
    %v67 = vld [vmem:[%s0] sm:$0xff]
    %v68 = vld [vmem:[%s0 + $0x8] sm:$0xff]
    %v69 = vld [vmem:[%s0 + $0x10] sm:$0xff]
    %v70 = vld [vmem:[%s0 + $0x18] sm:$0xff]
    %v71 = vld [vmem:[%s0 + $0x20] sm:$0xff]
    %v72 = vld [vmem:[%s0 + $0x28] sm:$0xff]
    %v73 = vld [vmem:[%s0 + $0x30] sm:$0xff]
    %v74 = vld [vmem:[%s0 + $0x38] sm:$0xff]
    %v75 = vld [vmem:[%s1] sm:$0x1]
    %v76 = vld [vmem:[%s3] sm:$0x1]
    %v78 = vperm.slane %v76, 0
    %vm80 = vcmask 7168
    %v82 = vsel %vm80, %v67, 0
    %v85 = vsel %vm80, %v68, 0
    %v88 = vsel %vm80, %v69, 0
    %v91 = vsel %vm80, %v70, 0
    %v94 = vsel %vm80, %v71, 0
    %v97 = vsel %vm80, %v72, 0
    %v100 = vsel %vm80, %v73, 0
    %v103 = vsel %vm80, %v74, 0
    %vm105 = vcmask 1040384
    %v107 = vsel %vm105, %v75, 0
    %109 = vmatpush.msra.mxu0 0.0
    %110 = vmatpush.msra.mxu0 0.0
    %111 = vmatpush.msra.mxu0 0.0
    %112 = vmatpush.msra.mxu0 0.0
    %113 = vmatpush.msra.mxu0 0.0
    %114 = vmatpush.msra.mxu0 0.0
    %115 = vmatpush.msra.mxu0 0.0
    %116 = vmatpush.msra.mxu0 0.0
    %117 = vmatpush.msra.mxu0 0.0
    %118 = vmatpush.msra.mxu0 0.0
    %119 = vmatpush.msra.mxu0 0.0
    %120 = vmatpush.msra.mxu0 0.0
    %121 = vmatpush.msra.mxu0 0.0
    %122 = vmatpush.msra.mxu0 0.0
    %123 = vmatpush.msra.mxu0 0.0
    %124 = vmatpush.msra.mxu0 %v107
    %125 = vmatmul.f32.gmra.mxu0 %v82
    %v126 = vpop.f32.mrf.mxu0
    %v127 = vadd.f32 %v78, %v126
    %128 = vmatmul.f32.gmra.mxu0 %v85
    %v129 = vpop.f32.mrf.mxu0
    %v130 = vadd.f32 %v78, %v129
    %131 = vmatmul.f32.gmra.mxu0 %v88
    %v132 = vpop.f32.mrf.mxu0
    %v133 = vadd.f32 %v78, %v132
    %134 = vmatmul.f32.gmra.mxu0 %v91
    %v135 = vpop.f32.mrf.mxu0
    %v136 = vadd.f32 %v78, %v135
    %137 = vmatmul.f32.gmra.mxu0 %v94
    %v138 = vpop.f32.mrf.mxu0
    %v139 = vadd.f32 %v78, %v138
    %140 = vmatmul.f32.gmra.mxu0 %v97
    %v141 = vpop.f32.mrf.mxu0
    %v142 = vadd.f32 %v78, %v141
    %143 = vmatmul.f32.gmra.mxu0 %v100
    %v144 = vpop.f32.mrf.mxu0
    %v145 = vadd.f32 %v78, %v144
    %146 = vmatmul.f32.gmra.mxu0 %v103
    %v147 = vpop.f32.mrf.mxu0
    %v148 = vadd.f32 %v78, %v147
    %149 = vdwg.mxu0
    %v150 = vld [vmem:[%s2] sm:$0xff]
    %v151 = vld [vmem:[%s2 + $0x8] sm:$0xff]
    %v152 = vld [vmem:[%s2 + $0x10] sm:$0xff]
    %v153 = vld [vmem:[%s2 + $0x18] sm:$0xff]
    %v154 = vld [vmem:[%s4] sm:$0xff]
    %v155 = vld [vmem:[%s4 + $0x8] sm:$0xff]
    %v156 = vld [vmem:[%s4 + $0x10] sm:$0xff]
    %v157 = vld [vmem:[%s4 + $0x18] sm:$0xff]
    %v158 = vld [vmem:[%s4 + $0x20] sm:$0xff]
    %v159 = vld [vmem:[%s4 + $0x28] sm:$0xff]
    %v160 = vld [vmem:[%s4 + $0x30] sm:$0xff]
    %v161 = vld [vmem:[%s4 + $0x38] sm:$0xff]
    %v162 = vld [vmem:[%s5] sm:$0x1]
    %v164 = vperm.slane %v162, 0
    %vm166 = vcmask 261120
    %v168 = vsel %vm166, 0.0, 0
    %170 = vmatpush.msra.mxu0 0.0
    %171 = vmatpush.msra.mxu0 0.0
    %172 = vmatpush.msra.mxu0 0.0
    %173 = vmatpush.msra.mxu0 0.0
    %174 = vmatpush.msra.mxu0 0.0
    %175 = vmatpush.msra.mxu0 0.0
    %176 = vmatpush.msra.mxu0 0.0
    %177 = vmatpush.msra.mxu0 0.0
    %178 = vmatpush.msra.mxu0 0.0
    %179 = vmatpush.msra.mxu0 0.0
    %180 = vmatpush.msra.mxu0 0.0
    %181 = vmatpush.msra.mxu0 0.0
    %182 = vmatpush.msra.mxu0 %v153
    %183 = vmatpush.msra.mxu0 %v152
    %184 = vmatpush.msra.mxu0 %v151
    %185 = vmatpush.msra.mxu0 %v150
    %186 = vmatmul.f32.gmra.mxu0 %v168
    %v187 = vpop.f32.mrf.mxu0
    %v188 = vadd.f32 0.0, %v187
    %189 = vdwg.mxu0
    %v190 = vadd.f32 %v127, %v188
    %v191 = vxor.u32 %v190, 2147483648
    %v192 = vmul.f32 %v191, 1.442695
    %v193 = vpow.pop %v192
    %v194 = vadd.f32 %v193, 1.0
    %v195 = vrcp.pop %v194
    %v196 = vmul.f32 %v194, %v195
    %v197 = vsub.f32 1.0, %v196
    %v198 = vmul.f32 %v195, %v197
    %v199 = vadd.f32 %v195, %v198
    %vm200 = vweird.f32 %v194
    %vm201 = vweird.f32 %v195
    %vm202 = vmor %vm200, %vm201
    %v203 = vsel %vm202, %v195, %v199
    %v204 = vand.u32 2147483647, %v194
    %vm205 = vcmp.eq.f32.partialorder %v204, 8.507059e+37
    %v206 = vand.u32 %v194, 2147483648
    %v207 = vor.u32 1.1754944e-38, %v206
    %v208 = vsel %vm205, %v207, %v203
    %v209 = vmul.f32 1.0, %v208
    %v210 = vtanh.pop %v190
    %v211 = vmul.f32 %v209, 0.0
    %213 = vrot.lane.b32.xlu0 %v210, 64
    %v214 = vpop.permute.xlu0 %213
    %v216 = vmul.f32 %v209, %v214
    %218 = vrot.lane.b32.xlu0 %v216, 32
    %v219 = vpop.permute.xlu0 %218
    %v221 = vadd.f32 %v211, %v219
    %v222 = vtanh.pop %v221
    %224 = vrot.lane.b32.xlu0 %v222, 64
    %v225 = vpop.permute.xlu0 %224
    %v227 = vmul.f32 %v209, %v225
    %229 = vrot.lane.b32.xlu0 %v227, 32
    %v230 = vpop.permute.xlu0 %229
    %v232 = vsel %vm166, %v230, 0.0
    %vm233 = vcmask 523264
    %v235 = vsel %vm233, %v232, 0
    %237 = vmatpush.msra.mxu0 0.0
    %238 = vmatpush.msra.mxu0 0.0
    %239 = vmatpush.msra.mxu0 0.0
    %240 = vmatpush.msra.mxu0 0.0
    %241 = vmatpush.msra.mxu0 0.0
    %242 = vmatpush.msra.mxu0 0.0
    %243 = vmatpush.msra.mxu0 0.0
    %244 = vmatpush.msra.mxu0 0.0
    %245 = vmatpush.msra.mxu0 %v161
    %246 = vmatpush.msra.mxu0 %v160
    %247 = vmatpush.msra.mxu0 %v159
    %248 = vmatpush.msra.mxu0 %v158
    %249 = vmatpush.msra.mxu0 %v157
    %250 = vmatpush.msra.mxu0 %v156
    %251 = vmatpush.msra.mxu0 %v155
    %252 = vmatpush.msra.mxu0 %v154
    %253 = vmatmul.f32.gmra.mxu0 %v235
    %v254 = vpop.f32.mrf.mxu0
    %v255 = vadd.f32 %v164, %v254
    %256 = vdwg.mxu0
    %v257 = vxor.u32 %v255, 2147483648
    %v258 = vmul.f32 %v257, 1.442695
    %v259 = vpow.pop %v258
    %v260 = vadd.f32 %v259, 1.0
    %v261 = vrcp.pop %v260
    %v262 = vmul.f32 %v260, %v261
    %v263 = vsub.f32 1.0, %v262
    %v264 = vmul.f32 %v261, %v263
    %v265 = vadd.f32 %v261, %v264
    %vm266 = vweird.f32 %v260
    %vm267 = vweird.f32 %v261
    %vm268 = vmor %vm266, %vm267
    %v269 = vsel %vm268, %v261, %v265
    %v270 = vand.u32 2147483647, %v260
    %vm271 = vcmp.eq.f32.partialorder %v270, 8.507059e+37
    %v272 = vand.u32 %v260, 2147483648
    %v273 = vor.u32 1.1754944e-38, %v272
    %v274 = vsel %vm271, %v273, %v269
    %v275 = vmul.f32 1.0, %v274
    %v276 = vtanh.pop %v255
    %v277 = vmul.f32 %v275, 0.0
    %279 = vrot.lane.b32.xlu0 %v276, 64
    %v280 = vpop.permute.xlu0 %279
    %v282 = vmul.f32 %v275, %v280
    %284 = vrot.lane.b32.xlu0 %v282, 32
    %v285 = vpop.permute.xlu0 %284
    %v287 = vadd.f32 %v277, %v285
    %v288 = vtanh.pop %v287
    %290 = vrot.lane.b32.xlu0 %v288, 64
    %v291 = vpop.permute.xlu0 %290
    %v293 = vmul.f32 %v275, %v291
    %v294 = vsel %vm166, %v230, 0
    %296 = vmatpush.msra.mxu0 0.0
    %297 = vmatpush.msra.mxu0 0.0
    %298 = vmatpush.msra.mxu0 0.0
    %299 = vmatpush.msra.mxu0 0.0
    %300 = vmatpush.msra.mxu0 0.0
    %301 = vmatpush.msra.mxu0 0.0
    %302 = vmatpush.msra.mxu0 0.0
    %303 = vmatpush.msra.mxu0 0.0
    %304 = vmatpush.msra.mxu0 0.0
    %305 = vmatpush.msra.mxu0 0.0
    %306 = vmatpush.msra.mxu0 0.0
    %307 = vmatpush.msra.mxu0 0.0
    %308 = vmatpush.msra.mxu0 %v153
    %309 = vmatpush.msra.mxu0 %v152
    %310 = vmatpush.msra.mxu0 %v151
    %311 = vmatpush.msra.mxu0 %v150
    %312 = vmatmul.f32.gmra.mxu0 %v294
    %v313 = vpop.f32.mrf.mxu0
    %v314 = vadd.f32 0.0, %v313
    %315 = vdwg.mxu0
    %v316 = vadd.f32 %v130, %v314
    %v317 = vxor.u32 %v316, 2147483648
    %v318 = vmul.f32 %v317, 1.442695
    %v319 = vpow.pop %v318
    %v320 = vadd.f32 %v319, 1.0
    %v321 = vrcp.pop %v320
    %v322 = vmul.f32 %v320, %v321
    %v323 = vsub.f32 1.0, %v322
    %v324 = vmul.f32 %v321, %v323
    %v325 = vadd.f32 %v321, %v324
    %vm326 = vweird.f32 %v320
    %vm327 = vweird.f32 %v321
    %vm328 = vmor %vm326, %vm327
    %v329 = vsel %vm328, %v321, %v325
    %v330 = vand.u32 2147483647, %v320
    %vm331 = vcmp.eq.f32.partialorder %v330, 8.507059e+37
    %v332 = vand.u32 %v320, 2147483648
    %v333 = vor.u32 1.1754944e-38, %v332
    %v334 = vsel %vm331, %v333, %v329
    %v335 = vmul.f32 1.0, %v334
    %v336 = vtanh.pop %v316
    %v337 = vmul.f32 %v335, %v221
    %339 = vrot.lane.b32.xlu0 %v336, 64
    %v340 = vpop.permute.xlu0 %339
    %v342 = vmul.f32 %v335, %v340
    %344 = vrot.lane.b32.xlu0 %v342, 32
    %v345 = vpop.permute.xlu0 %344
    %v347 = vadd.f32 %v337, %v345
    %v348 = vtanh.pop %v347
    %350 = vrot.lane.b32.xlu0 %v348, 64
    %v351 = vpop.permute.xlu0 %350
    %v353 = vmul.f32 %v335, %v351
    %355 = vrot.lane.b32.xlu0 %v353, 32
    %v356 = vpop.permute.xlu0 %355
    %359 = vrot.lane.b32.xlu0 %v293, 64
    %v360 = vpop.permute.xlu0 %359
    %v362 = vsel %vm166, %v356, %v360
    %v364 = vsel %vm233, %v362, 0
    %366 = vmatpush.msra.mxu0 0.0
    %367 = vmatpush.msra.mxu0 0.0
    %368 = vmatpush.msra.mxu0 0.0
    %369 = vmatpush.msra.mxu0 0.0
    %370 = vmatpush.msra.mxu0 0.0
    %371 = vmatpush.msra.mxu0 0.0
    %372 = vmatpush.msra.mxu0 0.0
    %373 = vmatpush.msra.mxu0 0.0
    %374 = vmatpush.msra.mxu0 %v161
    %375 = vmatpush.msra.mxu0 %v160
    %376 = vmatpush.msra.mxu0 %v159
    %377 = vmatpush.msra.mxu0 %v158
    %378 = vmatpush.msra.mxu0 %v157
    %379 = vmatpush.msra.mxu0 %v156
    %380 = vmatpush.msra.mxu0 %v155
    %381 = vmatpush.msra.mxu0 %v154
    %382 = vmatmul.f32.gmra.mxu0 %v364
    %v383 = vpop.f32.mrf.mxu0
    %v384 = vadd.f32 %v164, %v383
    %385 = vdwg.mxu0
    %v386 = vxor.u32 %v384, 2147483648
    %v387 = vmul.f32 %v386, 1.442695
    %v388 = vpow.pop %v387
    %v389 = vadd.f32 %v388, 1.0
    %v390 = vrcp.pop %v389
    %v391 = vmul.f32 %v389, %v390
    %v392 = vsub.f32 1.0, %v391
    %v393 = vmul.f32 %v390, %v392
    %v394 = vadd.f32 %v390, %v393
    %vm395 = vweird.f32 %v389
    %vm396 = vweird.f32 %v390
    %vm397 = vmor %vm395, %vm396
    %v398 = vsel %vm397, %v390, %v394
    %v399 = vand.u32 2147483647, %v389
    %vm400 = vcmp.eq.f32.partialorder %v399, 8.507059e+37
    %v401 = vand.u32 %v389, 2147483648
    %v402 = vor.u32 1.1754944e-38, %v401
    %v403 = vsel %vm400, %v402, %v398
    %v404 = vmul.f32 1.0, %v403
    %v405 = vtanh.pop %v384
    %v406 = vmul.f32 %v404, %v287
    %408 = vrot.lane.b32.xlu0 %v405, 64
    %v409 = vpop.permute.xlu0 %408
    %v411 = vmul.f32 %v404, %v409
    %413 = vrot.lane.b32.xlu0 %v411, 32
    %v414 = vpop.permute.xlu0 %413
    %v416 = vadd.f32 %v406, %v414
    %v417 = vtanh.pop %v416
    %419 = vrot.lane.b32.xlu0 %v417, 64
    %v420 = vpop.permute.xlu0 %419
    %v422 = vmul.f32 %v404, %v420
    %v423 = vsel %vm166, %v356, 0
    %425 = vmatpush.msra.mxu0 0.0
    %426 = vmatpush.msra.mxu0 0.0
    %427 = vmatpush.msra.mxu0 0.0
    %428 = vmatpush.msra.mxu0 0.0
    %429 = vmatpush.msra.mxu0 0.0
    %430 = vmatpush.msra.mxu0 0.0
    %431 = vmatpush.msra.mxu0 0.0
    %432 = vmatpush.msra.mxu0 0.0
    %433 = vmatpush.msra.mxu0 0.0
    %434 = vmatpush.msra.mxu0 0.0
    %435 = vmatpush.msra.mxu0 0.0
    %436 = vmatpush.msra.mxu0 0.0
    %437 = vmatpush.msra.mxu0 %v153
    %438 = vmatpush.msra.mxu0 %v152
    %439 = vmatpush.msra.mxu0 %v151
    %440 = vmatpush.msra.mxu0 %v150
    %441 = vmatmul.f32.gmra.mxu0 %v423
    %v442 = vpop.f32.mrf.mxu0
    %v443 = vadd.f32 0.0, %v442
    %444 = vdwg.mxu0
    %v445 = vadd.f32 %v133, %v443
    %v446 = vxor.u32 %v445, 2147483648
    %v447 = vmul.f32 %v446, 1.442695
    %v448 = vpow.pop %v447
    %v449 = vadd.f32 %v448, 1.0
    %v450 = vrcp.pop %v449
    %v451 = vmul.f32 %v449, %v450
    %v452 = vsub.f32 1.0, %v451
    %v453 = vmul.f32 %v450, %v452
    %v454 = vadd.f32 %v450, %v453
    %vm455 = vweird.f32 %v449
    %vm456 = vweird.f32 %v450
    %vm457 = vmor %vm455, %vm456
    %v458 = vsel %vm457, %v450, %v454
    %v459 = vand.u32 2147483647, %v449
    %vm460 = vcmp.eq.f32.partialorder %v459, 8.507059e+37
    %v461 = vand.u32 %v449, 2147483648
    %v462 = vor.u32 1.1754944e-38, %v461
    %v463 = vsel %vm460, %v462, %v458
    %v464 = vmul.f32 1.0, %v463
    %v465 = vtanh.pop %v445
    %v466 = vmul.f32 %v464, %v347
    %468 = vrot.lane.b32.xlu0 %v465, 64
    %v469 = vpop.permute.xlu0 %468
    %v471 = vmul.f32 %v464, %v469
    %473 = vrot.lane.b32.xlu0 %v471, 32
    %v474 = vpop.permute.xlu0 %473
    %v476 = vadd.f32 %v466, %v474
    %v477 = vtanh.pop %v476
    %479 = vrot.lane.b32.xlu0 %v477, 64
    %v480 = vpop.permute.xlu0 %479
    %v482 = vmul.f32 %v464, %v480
    %484 = vrot.lane.b32.xlu0 %v482, 32
    %v485 = vpop.permute.xlu0 %484
    %488 = vrot.lane.b32.xlu0 %v422, 64
    %v489 = vpop.permute.xlu0 %488
    %v491 = vsel %vm166, %v485, %v489
    %v493 = vsel %vm233, %v491, 0
    %495 = vmatpush.msra.mxu0 0.0
    %496 = vmatpush.msra.mxu0 0.0
    %497 = vmatpush.msra.mxu0 0.0
    %498 = vmatpush.msra.mxu0 0.0
    %499 = vmatpush.msra.mxu0 0.0
    %500 = vmatpush.msra.mxu0 0.0
    %501 = vmatpush.msra.mxu0 0.0
    %502 = vmatpush.msra.mxu0 0.0
    %503 = vmatpush.msra.mxu0 %v161
    %504 = vmatpush.msra.mxu0 %v160
    %505 = vmatpush.msra.mxu0 %v159
    %506 = vmatpush.msra.mxu0 %v158
    %507 = vmatpush.msra.mxu0 %v157
    %508 = vmatpush.msra.mxu0 %v156
    %509 = vmatpush.msra.mxu0 %v155
    %510 = vmatpush.msra.mxu0 %v154
    %511 = vmatmul.f32.gmra.mxu0 %v493
    %v512 = vpop.f32.mrf.mxu0
    %v513 = vadd.f32 %v164, %v512
    %514 = vdwg.mxu0
    %v515 = vxor.u32 %v513, 2147483648
    %v516 = vmul.f32 %v515, 1.442695
    %v517 = vpow.pop %v516
    %v518 = vadd.f32 %v517, 1.0
    %v519 = vrcp.pop %v518
    %v520 = vmul.f32 %v518, %v519
    %v521 = vsub.f32 1.0, %v520
    %v522 = vmul.f32 %v519, %v521
    %v523 = vadd.f32 %v519, %v522
    %vm524 = vweird.f32 %v518
    %vm525 = vweird.f32 %v519
    %vm526 = vmor %vm524, %vm525
    %v527 = vsel %vm526, %v519, %v523
    %v528 = vand.u32 2147483647, %v518
    %vm529 = vcmp.eq.f32.partialorder %v528, 8.507059e+37
    %v530 = vand.u32 %v518, 2147483648
    %v531 = vor.u32 1.1754944e-38, %v530
    %v532 = vsel %vm529, %v531, %v527
    %v533 = vmul.f32 1.0, %v532
    %v534 = vtanh.pop %v513
    %v535 = vmul.f32 %v533, %v416
    %537 = vrot.lane.b32.xlu0 %v534, 64
    %v538 = vpop.permute.xlu0 %537
    %v540 = vmul.f32 %v533, %v538
    %542 = vrot.lane.b32.xlu0 %v540, 32
    %v543 = vpop.permute.xlu0 %542
    %v545 = vadd.f32 %v535, %v543
    %v546 = vtanh.pop %v545
    %548 = vrot.lane.b32.xlu0 %v546, 64
    %v549 = vpop.permute.xlu0 %548
    %v551 = vmul.f32 %v533, %v549
    %v552 = vsel %vm166, %v485, 0
    %554 = vmatpush.msra.mxu0 0.0
    %555 = vmatpush.msra.mxu0 0.0
    %556 = vmatpush.msra.mxu0 0.0
    %557 = vmatpush.msra.mxu0 0.0
    %558 = vmatpush.msra.mxu0 0.0
    %559 = vmatpush.msra.mxu0 0.0
    %560 = vmatpush.msra.mxu0 0.0
    %561 = vmatpush.msra.mxu0 0.0
    %562 = vmatpush.msra.mxu0 0.0
    %563 = vmatpush.msra.mxu0 0.0
    %564 = vmatpush.msra.mxu0 0.0
    %565 = vmatpush.msra.mxu0 0.0
    %566 = vmatpush.msra.mxu0 %v153
    %567 = vmatpush.msra.mxu0 %v152
    %568 = vmatpush.msra.mxu0 %v151
    %569 = vmatpush.msra.mxu0 %v150
    %570 = vmatmul.f32.gmra.mxu0 %v552
    %v571 = vpop.f32.mrf.mxu0
    %v572 = vadd.f32 0.0, %v571
    %573 = vdwg.mxu0
    %v574 = vadd.f32 %v136, %v572
    %v575 = vxor.u32 %v574, 2147483648
    %v576 = vmul.f32 %v575, 1.442695
    %v577 = vpow.pop %v576
    %v578 = vadd.f32 %v577, 1.0
    %v579 = vrcp.pop %v578
    %v580 = vmul.f32 %v578, %v579
    %v581 = vsub.f32 1.0, %v580
    %v582 = vmul.f32 %v579, %v581
    %v583 = vadd.f32 %v579, %v582
    %vm584 = vweird.f32 %v578
    %vm585 = vweird.f32 %v579
    %vm586 = vmor %vm584, %vm585
    %v587 = vsel %vm586, %v579, %v583
    %v588 = vand.u32 2147483647, %v578
    %vm589 = vcmp.eq.f32.partialorder %v588, 8.507059e+37
    %v590 = vand.u32 %v578, 2147483648
    %v591 = vor.u32 1.1754944e-38, %v590
    %v592 = vsel %vm589, %v591, %v587
    %v593 = vmul.f32 1.0, %v592
    %v594 = vtanh.pop %v574
    %v595 = vmul.f32 %v593, %v476
    %597 = vrot.lane.b32.xlu0 %v594, 64
    %v598 = vpop.permute.xlu0 %597
    %v600 = vmul.f32 %v593, %v598
    %602 = vrot.lane.b32.xlu0 %v600, 32
    %v603 = vpop.permute.xlu0 %602
    %v605 = vadd.f32 %v595, %v603
    %v606 = vtanh.pop %v605
    %608 = vrot.lane.b32.xlu0 %v606, 64
    %v609 = vpop.permute.xlu0 %608
    %v611 = vmul.f32 %v593, %v609
    %613 = vrot.lane.b32.xlu0 %v611, 32
    %v614 = vpop.permute.xlu0 %613
    %617 = vrot.lane.b32.xlu0 %v551, 64
    %v618 = vpop.permute.xlu0 %617
    %v620 = vsel %vm166, %v614, %v618
    %v622 = vsel %vm233, %v620, 0
    %624 = vmatpush.msra.mxu0 0.0
    %625 = vmatpush.msra.mxu0 0.0
    %626 = vmatpush.msra.mxu0 0.0
    %627 = vmatpush.msra.mxu0 0.0
    %628 = vmatpush.msra.mxu0 0.0
    %629 = vmatpush.msra.mxu0 0.0
    %630 = vmatpush.msra.mxu0 0.0
    %631 = vmatpush.msra.mxu0 0.0
    %632 = vmatpush.msra.mxu0 %v161
    %633 = vmatpush.msra.mxu0 %v160
    %634 = vmatpush.msra.mxu0 %v159
    %635 = vmatpush.msra.mxu0 %v158
    %636 = vmatpush.msra.mxu0 %v157
    %637 = vmatpush.msra.mxu0 %v156
    %638 = vmatpush.msra.mxu0 %v155
    %639 = vmatpush.msra.mxu0 %v154
    %640 = vmatmul.f32.gmra.mxu0 %v622
    %v641 = vpop.f32.mrf.mxu0
    %v642 = vadd.f32 %v164, %v641
    %643 = vdwg.mxu0
    %v644 = vxor.u32 %v642, 2147483648
    %v645 = vmul.f32 %v644, 1.442695
    %v646 = vpow.pop %v645
    %v647 = vadd.f32 %v646, 1.0
    %v648 = vrcp.pop %v647
    %v649 = vmul.f32 %v647, %v648
    %v650 = vsub.f32 1.0, %v649
    %v651 = vmul.f32 %v648, %v650
    %v652 = vadd.f32 %v648, %v651
    %vm653 = vweird.f32 %v647
    %vm654 = vweird.f32 %v648
    %vm655 = vmor %vm653, %vm654
    %v656 = vsel %vm655, %v648, %v652
    %v657 = vand.u32 2147483647, %v647
    %vm658 = vcmp.eq.f32.partialorder %v657, 8.507059e+37
    %v659 = vand.u32 %v647, 2147483648
    %v660 = vor.u32 1.1754944e-38, %v659
    %v661 = vsel %vm658, %v660, %v656
    %v662 = vmul.f32 1.0, %v661
    %v663 = vtanh.pop %v642
    %v664 = vmul.f32 %v662, %v545
    %666 = vrot.lane.b32.xlu0 %v663, 64
    %v667 = vpop.permute.xlu0 %666
    %v669 = vmul.f32 %v662, %v667
    %671 = vrot.lane.b32.xlu0 %v669, 32
    %v672 = vpop.permute.xlu0 %671
    %v674 = vadd.f32 %v664, %v672
    %v675 = vtanh.pop %v674
    %677 = vrot.lane.b32.xlu0 %v675, 64
    %v678 = vpop.permute.xlu0 %677
    %v680 = vmul.f32 %v662, %v678
    %v681 = vsel %vm166, %v614, 0
    %683 = vmatpush.msra.mxu0 0.0
    %684 = vmatpush.msra.mxu0 0.0
    %685 = vmatpush.msra.mxu0 0.0
    %686 = vmatpush.msra.mxu0 0.0
    %687 = vmatpush.msra.mxu0 0.0
    %688 = vmatpush.msra.mxu0 0.0
    %689 = vmatpush.msra.mxu0 0.0
    %690 = vmatpush.msra.mxu0 0.0
    %691 = vmatpush.msra.mxu0 0.0
    %692 = vmatpush.msra.mxu0 0.0
    %693 = vmatpush.msra.mxu0 0.0
    %694 = vmatpush.msra.mxu0 0.0
    %695 = vmatpush.msra.mxu0 %v153
    %696 = vmatpush.msra.mxu0 %v152
    %697 = vmatpush.msra.mxu0 %v151
    %698 = vmatpush.msra.mxu0 %v150
    %699 = vmatmul.f32.gmra.mxu0 %v681
    %v700 = vpop.f32.mrf.mxu0
    %v701 = vadd.f32 0.0, %v700
    %702 = vdwg.mxu0
    %v703 = vadd.f32 %v139, %v701
    %v704 = vxor.u32 %v703, 2147483648
    %v705 = vmul.f32 %v704, 1.442695
    %v706 = vpow.pop %v705
    %v707 = vadd.f32 %v706, 1.0
    %v708 = vrcp.pop %v707
    %v709 = vmul.f32 %v707, %v708
    %v710 = vsub.f32 1.0, %v709
    %v711 = vmul.f32 %v708, %v710
    %v712 = vadd.f32 %v708, %v711
    %vm713 = vweird.f32 %v707
    %vm714 = vweird.f32 %v708
    %vm715 = vmor %vm713, %vm714
    %v716 = vsel %vm715, %v708, %v712
    %v717 = vand.u32 2147483647, %v707
    %vm718 = vcmp.eq.f32.partialorder %v717, 8.507059e+37
    %v719 = vand.u32 %v707, 2147483648
    %v720 = vor.u32 1.1754944e-38, %v719
    %v721 = vsel %vm718, %v720, %v716
    %v722 = vmul.f32 1.0, %v721
    %v723 = vtanh.pop %v703
    %v724 = vmul.f32 %v722, %v605
    %726 = vrot.lane.b32.xlu0 %v723, 64
    %v727 = vpop.permute.xlu0 %726
    %v729 = vmul.f32 %v722, %v727
    %731 = vrot.lane.b32.xlu0 %v729, 32
    %v732 = vpop.permute.xlu0 %731
    %v734 = vadd.f32 %v724, %v732
    %v735 = vtanh.pop %v734
    %737 = vrot.lane.b32.xlu0 %v735, 64
    %v738 = vpop.permute.xlu0 %737
    %v740 = vmul.f32 %v722, %v738
    %742 = vrot.lane.b32.xlu0 %v740, 32
    %v743 = vpop.permute.xlu0 %742
    %746 = vrot.lane.b32.xlu0 %v680, 64
    %v747 = vpop.permute.xlu0 %746
    %v749 = vsel %vm166, %v743, %v747
    %v751 = vsel %vm233, %v749, 0
    %753 = vmatpush.msra.mxu0 0.0
    %754 = vmatpush.msra.mxu0 0.0
    %755 = vmatpush.msra.mxu0 0.0
    %756 = vmatpush.msra.mxu0 0.0
    %757 = vmatpush.msra.mxu0 0.0
    %758 = vmatpush.msra.mxu0 0.0
    %759 = vmatpush.msra.mxu0 0.0
    %760 = vmatpush.msra.mxu0 0.0
    %761 = vmatpush.msra.mxu0 %v161
    %762 = vmatpush.msra.mxu0 %v160
    %763 = vmatpush.msra.mxu0 %v159
    %764 = vmatpush.msra.mxu0 %v158
    %765 = vmatpush.msra.mxu0 %v157
    %766 = vmatpush.msra.mxu0 %v156
    %767 = vmatpush.msra.mxu0 %v155
    %768 = vmatpush.msra.mxu0 %v154
    %769 = vmatmul.f32.gmra.mxu0 %v751
    %v770 = vpop.f32.mrf.mxu0
    %v771 = vadd.f32 %v164, %v770
    %772 = vdwg.mxu0
    %v773 = vxor.u32 %v771, 2147483648
    %v774 = vmul.f32 %v773, 1.442695
    %v775 = vpow.pop %v774
    %v776 = vadd.f32 %v775, 1.0
    %v777 = vrcp.pop %v776
    %v778 = vmul.f32 %v776, %v777
    %v779 = vsub.f32 1.0, %v778
    %v780 = vmul.f32 %v777, %v779
    %v781 = vadd.f32 %v777, %v780
    %vm782 = vweird.f32 %v776
    %vm783 = vweird.f32 %v777
    %vm784 = vmor %vm782, %vm783
    %v785 = vsel %vm784, %v777, %v781
    %v786 = vand.u32 2147483647, %v776
    %vm787 = vcmp.eq.f32.partialorder %v786, 8.507059e+37
    %v788 = vand.u32 %v776, 2147483648
    %v789 = vor.u32 1.1754944e-38, %v788
    %v790 = vsel %vm787, %v789, %v785
    %v791 = vmul.f32 1.0, %v790
    %v792 = vtanh.pop %v771
    %v793 = vmul.f32 %v791, %v674
    %795 = vrot.lane.b32.xlu0 %v792, 64
    %v796 = vpop.permute.xlu0 %795
    %v798 = vmul.f32 %v791, %v796
    %800 = vrot.lane.b32.xlu0 %v798, 32
    %v801 = vpop.permute.xlu0 %800
    %v803 = vadd.f32 %v793, %v801
    %v804 = vtanh.pop %v803
    %806 = vrot.lane.b32.xlu0 %v804, 64
    %v807 = vpop.permute.xlu0 %806
    %v809 = vmul.f32 %v791, %v807
    %v810 = vsel %vm166, %v743, 0
    %812 = vmatpush.msra.mxu0 0.0
    %813 = vmatpush.msra.mxu0 0.0
    %814 = vmatpush.msra.mxu0 0.0
    %815 = vmatpush.msra.mxu0 0.0
    %816 = vmatpush.msra.mxu0 0.0
    %817 = vmatpush.msra.mxu0 0.0
    %818 = vmatpush.msra.mxu0 0.0
    %819 = vmatpush.msra.mxu0 0.0
    %820 = vmatpush.msra.mxu0 0.0
    %821 = vmatpush.msra.mxu0 0.0
    %822 = vmatpush.msra.mxu0 0.0
    %823 = vmatpush.msra.mxu0 0.0
    %824 = vmatpush.msra.mxu0 %v153
    %825 = vmatpush.msra.mxu0 %v152
    %826 = vmatpush.msra.mxu0 %v151
    %827 = vmatpush.msra.mxu0 %v150
    %828 = vmatmul.f32.gmra.mxu0 %v810
    %v829 = vpop.f32.mrf.mxu0
    %v830 = vadd.f32 0.0, %v829
    %831 = vdwg.mxu0
    %v832 = vadd.f32 %v142, %v830
    %v833 = vxor.u32 %v832, 2147483648
    %v834 = vmul.f32 %v833, 1.442695
    %v835 = vpow.pop %v834
    %v836 = vadd.f32 %v835, 1.0
    %v837 = vrcp.pop %v836
    %v838 = vmul.f32 %v836, %v837
    %v839 = vsub.f32 1.0, %v838
    %v840 = vmul.f32 %v837, %v839
    %v841 = vadd.f32 %v837, %v840
    %vm842 = vweird.f32 %v836
    %vm843 = vweird.f32 %v837
    %vm844 = vmor %vm842, %vm843
    %v845 = vsel %vm844, %v837, %v841
    %v846 = vand.u32 2147483647, %v836
    %vm847 = vcmp.eq.f32.partialorder %v846, 8.507059e+37
    %v848 = vand.u32 %v836, 2147483648
    %v849 = vor.u32 1.1754944e-38, %v848
    %v850 = vsel %vm847, %v849, %v845
    %v851 = vmul.f32 1.0, %v850
    %v852 = vtanh.pop %v832
    %v853 = vmul.f32 %v851, %v734
    %855 = vrot.lane.b32.xlu0 %v852, 64
    %v856 = vpop.permute.xlu0 %855
    %v858 = vmul.f32 %v851, %v856
    %860 = vrot.lane.b32.xlu0 %v858, 32
    %v861 = vpop.permute.xlu0 %860
    %v863 = vadd.f32 %v853, %v861
    %v864 = vtanh.pop %v863
    %866 = vrot.lane.b32.xlu0 %v864, 64
    %v867 = vpop.permute.xlu0 %866
    %v869 = vmul.f32 %v851, %v867
    %871 = vrot.lane.b32.xlu0 %v869, 32
    %v872 = vpop.permute.xlu0 %871
    %875 = vrot.lane.b32.xlu0 %v809, 64
    %v876 = vpop.permute.xlu0 %875
    %v878 = vsel %vm166, %v872, %v876
    %v880 = vsel %vm233, %v878, 0
    %882 = vmatpush.msra.mxu0 0.0
    %883 = vmatpush.msra.mxu0 0.0
    %884 = vmatpush.msra.mxu0 0.0
    %885 = vmatpush.msra.mxu0 0.0
    %886 = vmatpush.msra.mxu0 0.0
    %887 = vmatpush.msra.mxu0 0.0
    %888 = vmatpush.msra.mxu0 0.0
    %889 = vmatpush.msra.mxu0 0.0
    %890 = vmatpush.msra.mxu0 %v161
    %891 = vmatpush.msra.mxu0 %v160
    %892 = vmatpush.msra.mxu0 %v159
    %893 = vmatpush.msra.mxu0 %v158
    %894 = vmatpush.msra.mxu0 %v157
    %895 = vmatpush.msra.mxu0 %v156
    %896 = vmatpush.msra.mxu0 %v155
    %897 = vmatpush.msra.mxu0 %v154
    %898 = vmatmul.f32.gmra.mxu0 %v880
    %v899 = vpop.f32.mrf.mxu0
    %v900 = vadd.f32 %v164, %v899
    %901 = vdwg.mxu0
    %v902 = vxor.u32 %v900, 2147483648
    %v903 = vmul.f32 %v902, 1.442695
    %v904 = vpow.pop %v903
    %v905 = vadd.f32 %v904, 1.0
    %v906 = vrcp.pop %v905
    %v907 = vmul.f32 %v905, %v906
    %v908 = vsub.f32 1.0, %v907
    %v909 = vmul.f32 %v906, %v908
    %v910 = vadd.f32 %v906, %v909
    %vm911 = vweird.f32 %v905
    %vm912 = vweird.f32 %v906
    %vm913 = vmor %vm911, %vm912
    %v914 = vsel %vm913, %v906, %v910
    %v915 = vand.u32 2147483647, %v905
    %vm916 = vcmp.eq.f32.partialorder %v915, 8.507059e+37
    %v917 = vand.u32 %v905, 2147483648
    %v918 = vor.u32 1.1754944e-38, %v917
    %v919 = vsel %vm916, %v918, %v914
    %v920 = vmul.f32 1.0, %v919
    %v921 = vtanh.pop %v900
    %v922 = vmul.f32 %v920, %v803
    %924 = vrot.lane.b32.xlu0 %v921, 64
    %v925 = vpop.permute.xlu0 %924
    %v927 = vmul.f32 %v920, %v925
    %929 = vrot.lane.b32.xlu0 %v927, 32
    %v930 = vpop.permute.xlu0 %929
    %v932 = vadd.f32 %v922, %v930
    %v933 = vtanh.pop %v932
    %935 = vrot.lane.b32.xlu0 %v933, 64
    %v936 = vpop.permute.xlu0 %935
    %v938 = vmul.f32 %v920, %v936
    %v939 = vsel %vm166, %v872, 0
    %941 = vmatpush.msra.mxu0 0.0
    %942 = vmatpush.msra.mxu0 0.0
    %943 = vmatpush.msra.mxu0 0.0
    %944 = vmatpush.msra.mxu0 0.0
    %945 = vmatpush.msra.mxu0 0.0
    %946 = vmatpush.msra.mxu0 0.0
    %947 = vmatpush.msra.mxu0 0.0
    %948 = vmatpush.msra.mxu0 0.0
    %949 = vmatpush.msra.mxu0 0.0
    %950 = vmatpush.msra.mxu0 0.0
    %951 = vmatpush.msra.mxu0 0.0
    %952 = vmatpush.msra.mxu0 0.0
    %953 = vmatpush.msra.mxu0 %v153
    %954 = vmatpush.msra.mxu0 %v152
    %955 = vmatpush.msra.mxu0 %v151
    %956 = vmatpush.msra.mxu0 %v150
    %957 = vmatmul.f32.gmra.mxu0 %v939
    %v958 = vpop.f32.mrf.mxu0
    %v959 = vadd.f32 0.0, %v958
    %960 = vdwg.mxu0
    %v961 = vadd.f32 %v145, %v959
    %v962 = vxor.u32 %v961, 2147483648
    %v963 = vmul.f32 %v962, 1.442695
    %v964 = vpow.pop %v963
    %v965 = vadd.f32 %v964, 1.0
    %v966 = vrcp.pop %v965
    %v967 = vmul.f32 %v965, %v966
    %v968 = vsub.f32 1.0, %v967
    %v969 = vmul.f32 %v966, %v968
    %v970 = vadd.f32 %v966, %v969
    %vm971 = vweird.f32 %v965
    %vm972 = vweird.f32 %v966
    %vm973 = vmor %vm971, %vm972
    %v974 = vsel %vm973, %v966, %v970
    %v975 = vand.u32 2147483647, %v965
    %vm976 = vcmp.eq.f32.partialorder %v975, 8.507059e+37
    %v977 = vand.u32 %v965, 2147483648
    %v978 = vor.u32 1.1754944e-38, %v977
    %v979 = vsel %vm976, %v978, %v974
    %v980 = vmul.f32 1.0, %v979
    %v981 = vtanh.pop %v961
    %v982 = vmul.f32 %v980, %v863
    %984 = vrot.lane.b32.xlu0 %v981, 64
    %v985 = vpop.permute.xlu0 %984
    %v987 = vmul.f32 %v980, %v985
    %989 = vrot.lane.b32.xlu0 %v987, 32
    %v990 = vpop.permute.xlu0 %989
    %v992 = vadd.f32 %v982, %v990
    %v993 = vtanh.pop %v992
    %995 = vrot.lane.b32.xlu0 %v993, 64
    %v996 = vpop.permute.xlu0 %995
    %v998 = vmul.f32 %v980, %v996
    %1000 = vrot.lane.b32.xlu0 %v998, 32
    %v1001 = vpop.permute.xlu0 %1000
    %1004 = vrot.lane.b32.xlu0 %v938, 64
    %v1005 = vpop.permute.xlu0 %1004
    %v1007 = vsel %vm166, %v1001, %v1005
    %v1009 = vsel %vm233, %v1007, 0
    %1011 = vmatpush.msra.mxu0 0.0
    %1012 = vmatpush.msra.mxu0 0.0
    %1013 = vmatpush.msra.mxu0 0.0
    %1014 = vmatpush.msra.mxu0 0.0
    %1015 = vmatpush.msra.mxu0 0.0
    %1016 = vmatpush.msra.mxu0 0.0
    %1017 = vmatpush.msra.mxu0 0.0
    %1018 = vmatpush.msra.mxu0 0.0
    %1019 = vmatpush.msra.mxu0 %v161
    %1020 = vmatpush.msra.mxu0 %v160
    %1021 = vmatpush.msra.mxu0 %v159
    %1022 = vmatpush.msra.mxu0 %v158
    %1023 = vmatpush.msra.mxu0 %v157
    %1024 = vmatpush.msra.mxu0 %v156
    %1025 = vmatpush.msra.mxu0 %v155
    %1026 = vmatpush.msra.mxu0 %v154
    %1027 = vmatmul.f32.gmra.mxu0 %v1009
    %v1028 = vpop.f32.mrf.mxu0
    %v1029 = vadd.f32 %v164, %v1028
    %1030 = vdwg.mxu0
    %v1031 = vxor.u32 %v1029, 2147483648
    %v1032 = vmul.f32 %v1031, 1.442695
    %v1033 = vpow.pop %v1032
    %v1034 = vadd.f32 %v1033, 1.0
    %v1035 = vrcp.pop %v1034
    %v1036 = vmul.f32 %v1034, %v1035
    %v1037 = vsub.f32 1.0, %v1036
    %v1038 = vmul.f32 %v1035, %v1037
    %v1039 = vadd.f32 %v1035, %v1038
    %vm1040 = vweird.f32 %v1034
    %vm1041 = vweird.f32 %v1035
    %vm1042 = vmor %vm1040, %vm1041
    %v1043 = vsel %vm1042, %v1035, %v1039
    %v1044 = vand.u32 2147483647, %v1034
    %vm1045 = vcmp.eq.f32.partialorder %v1044, 8.507059e+37
    %v1046 = vand.u32 %v1034, 2147483648
    %v1047 = vor.u32 1.1754944e-38, %v1046
    %v1048 = vsel %vm1045, %v1047, %v1043
    %v1049 = vmul.f32 1.0, %v1048
    %v1050 = vtanh.pop %v1029
    %v1051 = vmul.f32 %v1049, %v932
    %1053 = vrot.lane.b32.xlu0 %v1050, 64
    %v1054 = vpop.permute.xlu0 %1053
    %v1056 = vmul.f32 %v1049, %v1054
    %1058 = vrot.lane.b32.xlu0 %v1056, 32
    %v1059 = vpop.permute.xlu0 %1058
    %v1061 = vadd.f32 %v1051, %v1059
    %v1062 = vtanh.pop %v1061
    %1064 = vrot.lane.b32.xlu0 %v1062, 64
    %v1065 = vpop.permute.xlu0 %1064
    %v1067 = vmul.f32 %v1049, %v1065
    %v1068 = vsel %vm166, %v1001, 0
    %1070 = vmatpush.msra.mxu0 0.0
    %1071 = vmatpush.msra.mxu0 0.0
    %1072 = vmatpush.msra.mxu0 0.0
    %1073 = vmatpush.msra.mxu0 0.0
    %1074 = vmatpush.msra.mxu0 0.0
    %1075 = vmatpush.msra.mxu0 0.0
    %1076 = vmatpush.msra.mxu0 0.0
    %1077 = vmatpush.msra.mxu0 0.0
    %1078 = vmatpush.msra.mxu0 0.0
    %1079 = vmatpush.msra.mxu0 0.0
    %1080 = vmatpush.msra.mxu0 0.0
    %1081 = vmatpush.msra.mxu0 0.0
    %1082 = vmatpush.msra.mxu0 %v153
    %1083 = vmatpush.msra.mxu0 %v152
    %1084 = vmatpush.msra.mxu0 %v151
    %1085 = vmatpush.msra.mxu0 %v150
    %1086 = vmatmul.f32.gmra.mxu0 %v1068
    %v1087 = vpop.f32.mrf.mxu0
    %v1088 = vadd.f32 0.0, %v1087
    %1089 = vdwg.mxu0
    %v1090 = vadd.f32 %v148, %v1088
    %v1091 = vxor.u32 %v1090, 2147483648
    %v1092 = vmul.f32 %v1091, 1.442695
    %v1093 = vpow.pop %v1092
    %v1094 = vadd.f32 %v1093, 1.0
    %v1095 = vrcp.pop %v1094
    %v1096 = vmul.f32 %v1094, %v1095
    %v1097 = vsub.f32 1.0, %v1096
    %v1098 = vmul.f32 %v1095, %v1097
    %v1099 = vadd.f32 %v1095, %v1098
    %vm1100 = vweird.f32 %v1094
    %vm1101 = vweird.f32 %v1095
    %vm1102 = vmor %vm1100, %vm1101
    %v1103 = vsel %vm1102, %v1095, %v1099
    %v1104 = vand.u32 2147483647, %v1094
    %vm1105 = vcmp.eq.f32.partialorder %v1104, 8.507059e+37
    %v1106 = vand.u32 %v1094, 2147483648
    %v1107 = vor.u32 1.1754944e-38, %v1106
    %v1108 = vsel %vm1105, %v1107, %v1103
    %v1109 = vmul.f32 1.0, %v1108
    %v1110 = vtanh.pop %v1090
    %v1111 = vmul.f32 %v1109, %v992
    %1113 = vrot.lane.b32.xlu0 %v1110, 64
    %v1114 = vpop.permute.xlu0 %1113
    %v1116 = vmul.f32 %v1109, %v1114
    %1118 = vrot.lane.b32.xlu0 %v1116, 32
    %v1119 = vpop.permute.xlu0 %1118
    %v1121 = vadd.f32 %v1111, %v1119
    %v1122 = vtanh.pop %v1121
    %1124 = vrot.lane.b32.xlu0 %v1122, 64
    %v1125 = vpop.permute.xlu0 %1124
    %v1127 = vmul.f32 %v1109, %v1125
    %1129 = vrot.lane.b32.xlu0 %v1127, 32
    %v1130 = vpop.permute.xlu0 %1129
    %1133 = vrot.lane.b32.xlu0 %v1067, 64
    %v1134 = vpop.permute.xlu0 %1133
    %v1136 = vsel %vm166, %v1130, %v1134
    %v1138 = vsel %vm233, %v1136, 0
    %1140 = vmatpush.msra.mxu0 0.0
    %1141 = vmatpush.msra.mxu0 0.0
    %1142 = vmatpush.msra.mxu0 0.0
    %1143 = vmatpush.msra.mxu0 0.0
    %1144 = vmatpush.msra.mxu0 0.0
    %1145 = vmatpush.msra.mxu0 0.0
    %1146 = vmatpush.msra.mxu0 0.0
    %1147 = vmatpush.msra.mxu0 0.0
    %1148 = vmatpush.msra.mxu0 %v161
    %1149 = vmatpush.msra.mxu0 %v160
    %1150 = vmatpush.msra.mxu0 %v159
    %1151 = vmatpush.msra.mxu0 %v158
    %1152 = vmatpush.msra.mxu0 %v157
    %1153 = vmatpush.msra.mxu0 %v156
    %1154 = vmatpush.msra.mxu0 %v155
    %1155 = vmatpush.msra.mxu0 %v154
    %1156 = vmatmul.f32.gmra.mxu0 %v1138
    %v1157 = vpop.f32.mrf.mxu0
    %v1158 = vadd.f32 %v164, %v1157
    %1159 = vdwg.mxu0
    %v1160 = vxor.u32 %v1158, 2147483648
    %v1161 = vmul.f32 %v1160, 1.442695
    %v1162 = vpow.pop %v1161
    %v1163 = vadd.f32 %v1162, 1.0
    %v1164 = vrcp.pop %v1163
    %v1165 = vmul.f32 %v1163, %v1164
    %v1166 = vsub.f32 1.0, %v1165
    %v1167 = vmul.f32 %v1164, %v1166
    %v1168 = vadd.f32 %v1164, %v1167
    %vm1169 = vweird.f32 %v1163
    %vm1170 = vweird.f32 %v1164
    %vm1171 = vmor %vm1169, %vm1170
    %v1172 = vsel %vm1171, %v1164, %v1168
    %v1173 = vand.u32 2147483647, %v1163
    %vm1174 = vcmp.eq.f32.partialorder %v1173, 8.507059e+37
    %v1175 = vand.u32 %v1163, 2147483648
    %v1176 = vor.u32 1.1754944e-38, %v1175
    %v1177 = vsel %vm1174, %v1176, %v1172
    %v1178 = vmul.f32 1.0, %v1177
    %v1179 = vtanh.pop %v1158
    %v1180 = vmul.f32 %v1178, %v1061
    %1182 = vrot.lane.b32.xlu0 %v1179, 64
    %v1183 = vpop.permute.xlu0 %1182
    %v1185 = vmul.f32 %v1178, %v1183
    %1187 = vrot.lane.b32.xlu0 %v1185, 32
    %v1188 = vpop.permute.xlu0 %1187
    %v1190 = vadd.f32 %v1180, %v1188
    %v1191 = vtanh.pop %v1190
    %1193 = vrot.lane.b32.xlu0 %v1191, 64
    %v1194 = vpop.permute.xlu0 %1193
    %v1196 = vmul.f32 %v1178, %v1194
    %v1197 = vld [vmem:[#allocation2] sm:$0xff]
    %v1198 = vld [vmem:[#allocation2 + $0x8] sm:$0xff]
    %v1199 = vld [vmem:[#allocation2 + $0x10] sm:$0xff]
    %v1200 = vld [vmem:[#allocation2 + $0x18] sm:$0xff]
    %v1201 = vld [vmem:[%s7] sm:$0x1]
    %v1203 = vperm.slane %v1201, 0
    %1206 = vrot.lane.b32.xlu0 %v1196, 32
    %v1207 = vpop.permute.xlu0 %1206
    %v1208 = vsel %vm166, %v1207, 0
    %1210 = vmatpush.msra.mxu0 0.0
    %1211 = vmatpush.msra.mxu0 0.0
    %1212 = vmatpush.msra.mxu0 0.0
    %1213 = vmatpush.msra.mxu0 0.0
    %1214 = vmatpush.msra.mxu0 0.0
    %1215 = vmatpush.msra.mxu0 0.0
    %1216 = vmatpush.msra.mxu0 0.0
    %1217 = vmatpush.msra.mxu0 0.0
    %1218 = vmatpush.msra.mxu0 0.0
    %1219 = vmatpush.msra.mxu0 0.0
    %1220 = vmatpush.msra.mxu0 0.0
    %1221 = vmatpush.msra.mxu0 0.0
    %1222 = vmatpush.msra.mxu0 %v1200
    %1223 = vmatpush.msra.mxu0 %v1199
    %1224 = vmatpush.msra.mxu0 %v1198
    %1225 = vmatpush.msra.mxu0 %v1197
    %1226 = vmatmul.f32.gmra.mxu0 %v1208
    %v1227 = vpop.f32.mrf.mxu0
    %v1228 = vadd.f32 %v1203, %v1227
    %1229 = vdwg.mxu0
    %v1230 = vmax.f32 %v1228, 0.0
    %v1231 = vld [vmem:[#allocation4] sm:$0xff]
    %v1232 = vld [vmem:[#allocation4 + $0x8] sm:$0xff]
    %v1233 = vld [vmem:[#allocation4 + $0x10] sm:$0xff]
    %v1234 = vld [vmem:[#allocation4 + $0x18] sm:$0xff]
    %v1235 = vld [vmem:[#allocation4 + $0x20] sm:$0xff]
    %v1236 = vld [vmem:[#allocation4 + $0x28] sm:$0xff]
    %v1237 = vld [vmem:[#allocation4 + $0x30] sm:$0xff]
    %v1238 = vld [vmem:[#allocation4 + $0x38] sm:$0xff]
    %v1239 = vld [vmem:[#allocation4 + $0x40] sm:$0xff]
    %v1240 = vld [vmem:[#allocation4 + $0x48] sm:$0xff]
    %v1241 = vld [vmem:[#allocation4 + $0x50] sm:$0xff]
    %v1242 = vld [vmem:[#allocation4 + $0x58] sm:$0xff]
    %v1243 = vld [vmem:[#allocation4 + $0x60] sm:$0xff]
    %v1244 = vld [vmem:[#allocation4 + $0x68] sm:$0xff]
    %v1245 = vld [vmem:[#allocation4 + $0x70] sm:$0xff]
    %v1246 = vld [vmem:[#allocation4 + $0x78] sm:$0xff]
    %v1247 = vld [vmem:[%s9] sm:$0x1]
    %v1249 = vperm.slane %v1247, 0
    %1251 = vmatpush.msra.mxu0 %v1246
    %1252 = vmatpush.msra.mxu0 %v1245
    %1253 = vmatpush.msra.mxu0 %v1244
    %1254 = vmatpush.msra.mxu0 %v1243
    %1255 = vmatpush.msra.mxu0 %v1242
    %1256 = vmatpush.msra.mxu0 %v1241
    %1257 = vmatpush.msra.mxu0 %v1240
    %1258 = vmatpush.msra.mxu0 %v1239
    %1259 = vmatpush.msra.mxu0 %v1238
    %1260 = vmatpush.msra.mxu0 %v1237
    %1261 = vmatpush.msra.mxu0 %v1236
    %1262 = vmatpush.msra.mxu0 %v1235
    %1263 = vmatpush.msra.mxu0 %v1234
    %1264 = vmatpush.msra.mxu0 %v1233
    %1265 = vmatpush.msra.mxu0 %v1232
    %1266 = vmatpush.msra.mxu0 %v1231
    %1267 = vmatmul.f32.gmra.mxu0 %v1230
    %v1268 = vpop.f32.mrf.mxu0
    %v1269 = vadd.f32 %v1249, %v1268
    %1270 = vdwg.mxu0
    %1271 = vst [vmem:[%s10] sm:$0xff] %v1269
    // Predicated region
    $region50: #{lstm_model_forward.1} parent=1 // pred_check
      _
    $region51: #{lstm_model_forward.1} parent=1 // pred_check_branch
      %1273 = sbr.rel (0) target = $region53
    $region52: #{lstm_model_forward.1} parent=1 // pred_region
      _
    $region53: #{lstm_model_forward.1} parent=1 // pred_fallthru
      _
    // Predicated region
    $region54: #{lstm_model_forward.1} parent=1 // pred_check
      _
    $region55: #{lstm_model_forward.1} parent=1 // pred_check_branch
      %1275 = sbr.rel (0) target = $region57
    $region56: #{lstm_model_forward.1} parent=1 // pred_region
      _
    $region57: #{lstm_model_forward.1} parent=1 // pred_fallthru
      _
    %1276 = vsyncpa [#allocation3], 1
    %1277 = vsyncpa [#allocation5], 1

</llo_original>
